<compile_context>
chip_gen: v7x
topology: tpu7x:2x2x1
jax: 0.10.0
libtpu: 0.0.40
codegen_flags: <defaults>
</compile_context>

<pallas_src>
import functools

import jax
import jax.numpy as jnp
from jax import lax
from jax.experimental import pallas as pl
from jax.experimental.pallas import tpu as pltpu

LAYERNORM_EPS = 1e-12


def _bert_output_kernel(h_ref, w_ref, b_ref, inp_ref, gamma_ref, beta_ref, o_ref):
    # h_ref:   (tm, I)  activation tile (any float dtype; cast to bf16 for the MXU)
    # w_ref:   (I, H)   dense weight, pre-transposed and pre-cast to bf16 (resident)
    # b_ref:   (1, H)   dense bias
    # inp_ref: (tm, H)  residual input_tensor tile
    # gamma/beta: (1, H) LayerNorm affine params
    # o_ref:   (tm, H)  output tile
    h = h_ref[...].astype(jnp.bfloat16)
    x = jnp.dot(h, w_ref[...], preferred_element_type=jnp.float32)
    x = x + b_ref[...].astype(jnp.float32)
    # TODO(synk): dropout is identity here (eval mode); training-mode dropout would
    # need pltpu.prng_seed / prng_random_bits and a keep-mask scale.
    x = x + inp_ref[...].astype(jnp.float32)

    # BertLayerNorm over the hidden axis in f32.  Rows of a ragged last block that
    # lie past M hold unspecified data and may be non-finite; harmless, since Pallas
    # clips the out-of-bounds rows on the write.
    mu = jnp.mean(x, axis=-1, keepdims=True)
    d = x - mu
    var = jnp.mean(d * d, axis=-1, keepdims=True)
    inv = lax.rsqrt(var + LAYERNORM_EPS)
    y = d * inv * gamma_ref[...].astype(jnp.float32) + beta_ref[...].astype(jnp.float32)
    o_ref[...] = y.astype(o_ref.dtype)


def prepare_dense_weight(w_dense):
    """One-time weight prep outside the per-call path: (H, I) -> (I, H) bf16."""
    return jnp.asarray(w_dense).T.astype(jnp.bfloat16)


def _pick_vmem_limit_bytes():
    """Per-generation VMEM budget, leaving headroom below the physical capacity."""
    try:
        kind = jax.devices()[0].device_kind.lower()
    except Exception:
        return None
    if "v7" in kind or "tpu7" in kind or "7x" in kind:
        return 48 * 1024 * 1024      # v7x: 64 MiB physical per TensorCore
    if "v5" in kind or "v6" in kind:
        return 100 * 1024 * 1024     # v5e / v6e: 128 MiB physical
    return None                      # unknown part: keep the compiler default


def _choose_block_m(M, block_m):
    """Row tile: large enough to amortize the ~0.35us/step overhead, >= 2 grid steps
    when M >= 256 (so both v7x TensorCores get rows), block never exceeds M (except
    when M < 8, where block == full dim), and always 8-aligned otherwise."""
    if M >= 256:
        half = -(-((M + 1) // 2) // 128) * 128   # ceil(M/2) rounded up to 128
        return min(block_m, half)
    if M >= 8:
        return min(block_m, (M // 8) * 8)
    return M                                      # block equals the full (tiny) dim


@functools.partial(
    jax.jit,
    static_argnames=("block_m", "single_buffer_params", "vmem_limit_bytes"))
def _bert_output_forward_impl(hidden_states, input_tensor, w_t_bf16, b_dense,
                              gamma, beta, *, block_m, single_buffer_params,
                              vmem_limit_bytes):
    B, S, I = hidden_states.shape
    H = input_tensor.shape[-1]
    M = B * S

    # Reshapes are metadata-only; no HBM copies, no padding, no output slice.
    h2d = hidden_states.reshape(M, I)
    in2d = input_tensor.reshape(M, H)
    b2d = b_dense.reshape(1, H).astype(jnp.float32)
    g2d = gamma.reshape(1, H).astype(jnp.float32)
    bt2d = beta.reshape(1, H).astype(jnp.float32)

    # Constant-index operands stay VMEM-resident; single-buffer them when supported
    # (halves the resident-weight footprint, most valuable on v7x's 64 MiB VMEM).
    if single_buffer_params:
        def const_spec(shape):
            return pl.BlockSpec(shape, lambda i: (0, 0), pipeline_mode=pl.Buffered(1))
    else:
        def const_spec(shape):
            return pl.BlockSpec(shape, lambda i: (0, 0))

    grid = (pl.cdiv(M, block_m),)

    act_bytes = M * I * h2d.dtype.itemsize
    w_bytes = I * H * w_t_bf16.dtype.itemsize
    res_bytes = M * H * in2d.dtype.itemsize
    out_bytes = M * H * jnp.dtype(input_tensor.dtype).itemsize
    cost = pl.CostEstimate(
        flops=2 * M * I * H + 8 * M * H,
        transcendentals=M,
        bytes_accessed=act_bytes + w_bytes + res_bytes + out_bytes + 3 * H * 4)

    out = pl.pallas_call(
        _bert_output_kernel,
        out_shape=jax.ShapeDtypeStruct((M, H), input_tensor.dtype),
        grid_spec=pltpu.PrefetchScalarGridSpec(
            num_scalar_prefetch=0,
            grid=grid,
            in_specs=[
                pl.BlockSpec((block_m, I), lambda i: (i, 0)),   # activation tile
                const_spec((I, H)),                             # dense weight (resident)
                const_spec((1, H)),                             # dense bias
                pl.BlockSpec((block_m, H), lambda i: (i, 0)),   # residual tile
                const_spec((1, H)),                             # gamma
                const_spec((1, H)),                             # beta
            ],
            out_specs=pl.BlockSpec((block_m, H), lambda i: (i, 0)),
        ),
        compiler_params=pltpu.CompilerParams(
            dimension_semantics=("parallel",),
            vmem_limit_bytes=vmem_limit_bytes,
        ),
        cost_estimate=cost,
    )(h2d, w_t_bf16, b2d, in2d, g2d, bt2d)

    return out.reshape(B, S, H)


_SINGLE_BUFFER_OK = None  # probed once; pl.Buffered(1) fallback for older jax


def bert_output_forward(hidden_states, input_tensor, w_t_bf16, b_dense, gamma, beta,
                        block_m=None):
    """hidden_states: [B, S, I], input_tensor: [B, S, H] -> [B, S, H].

    Feed `hidden_states` in bf16 straight from the upstream intermediate GEMM
    (no wrapper-side cast -- the kernel casts for the MXU itself).  `w_t_bf16`
    must be the pre-transposed bf16 weight from prepare_dense_weight(w_dense),
    prepared once outside the per-call path.
    """
    global _SINGLE_BUFFER_OK
    B, S, _ = hidden_states.shape
    vmem = _pick_vmem_limit_bytes()
    if block_m is None:
        # 128-MiB-VMEM parts (v5e/v6e) afford 1024-row tiles; keep 512 elsewhere.
        block_m = 1024 if (vmem is not None and vmem >= 96 * 1024 * 1024) else 512
    bm = _choose_block_m(B * S, block_m)
    args = (hidden_states, input_tensor, w_t_bf16, b_dense, gamma, beta)

    if _SINGLE_BUFFER_OK is None:
        try:
            out = _bert_output_forward_impl(*args, block_m=bm,
                                            single_buffer_params=True,
                                            vmem_limit_bytes=vmem)
            jax.block_until_ready(out)
            _SINGLE_BUFFER_OK = True
            return out
        except Exception:
            _SINGLE_BUFFER_OK = False
    return _bert_output_forward_impl(*args, block_m=bm,
                                     single_buffer_params=_SINGLE_BUFFER_OK,
                                     vmem_limit_bytes=vmem)


def _reference(hidden_states, input_tensor, w_dense, b_dense, gamma, beta):
    x = jnp.einsum("bsi,hi->bsh", hidden_states, w_dense) + b_dense
    x = x + input_tensor
    mu = jnp.mean(x, axis=-1, keepdims=True)
    var = jnp.mean((x - mu) ** 2, axis=-1, keepdims=True)
    return (x - mu) / jnp.sqrt(var + LAYERNORM_EPS) * gamma + beta


if __name__ == "__main__":
    # Small BERT-like config: intermediate_size=512, hidden_size=128.
    INTERMEDIATE, HIDDEN = 512, 128

    key = jax.random.PRNGKey(0)
    k1, k2, k3, k4, k5, k6 = jax.random.split(key, 6)

    w_dense = jax.random.normal(k3, (HIDDEN, INTERMEDIATE), dtype=jnp.float32) * 0.02
    b_dense = jax.random.normal(k4, (HIDDEN,), dtype=jnp.float32) * 0.02
    gamma = jnp.ones((HIDDEN,), dtype=jnp.float32)
    beta = jnp.zeros((HIDDEN,), dtype=jnp.float32)
    w_t_bf16 = prepare_dense_weight(w_dense)   # one-time weight prep

    # Case 1: M = 2*128 = 256 -> block_m = 128, grid = (2,) so both v7x TCs get rows.
    # hidden_states fed in bf16, matching the recommended upstream-GEMM contract.
    B, S = 2, 128
    hidden_states = jax.random.normal(k1, (B, S, INTERMEDIATE), dtype=jnp.float32)
    hidden_states_bf16 = hidden_states.astype(jnp.bfloat16)
    input_tensor = jax.random.normal(k2, (B, S, HIDDEN), dtype=jnp.float32)

    out = bert_output_forward(hidden_states_bf16, input_tensor, w_t_bf16, b_dense,
                              gamma, beta)
    out = jax.block_until_ready(out)
    ref = _reference(hidden_states_bf16.astype(jnp.float32), input_tensor,
                     w_dense, b_dense, gamma, beta)
    assert out.shape == (B, S, HIDDEN)
    # bf16 MXU operands with f32 accumulation -> relaxed tolerance vs f32 reference.
    assert jnp.allclose(out, ref, atol=2e-2, rtol=2e-2), "mismatch vs reference (case 1)"

    # Case 2: ragged row count (M = 10, not a tile multiple) -> exercises the
    # Pallas-clipped last block with no HBM pad/slice round-trip.
    B2, S2 = 1, 10
    hs2 = jax.random.normal(k5, (B2, S2, INTERMEDIATE), dtype=jnp.float32)
    in2 = jax.random.normal(k6, (B2, S2, HIDDEN), dtype=jnp.float32)
    out2 = bert_output_forward(hs2, in2, w_t_bf16, b_dense, gamma, beta)
    out2 = jax.block_until_ready(out2)
    ref2 = _reference(hs2, in2, w_dense, b_dense, gamma, beta)
    assert out2.shape == (B2, S2, HIDDEN)
    assert jnp.allclose(out2, ref2, atol=2e-2, rtol=2e-2), "mismatch vs reference (case 2)"

    print("KERNEL_OK")
</pallas_src>

<mosaic_0001>
module attributes {stable_mosaic.version = 11 : i64} {
  func.func @_bert_output_kernel(%arg0: i32, %arg1: memref<128x512xbf16, #tpu.memory_space<vmem>>, %arg2: memref<512x128xbf16, #tpu.memory_space<vmem>>, %arg3: memref<1x128xf32, #tpu.memory_space<vmem>>, %arg4: memref<128x128xf32, #tpu.memory_space<vmem>>, %arg5: memref<1x128xf32, #tpu.memory_space<vmem>>, %arg6: memref<1x128xf32, #tpu.memory_space<vmem>>, %arg7: memref<128x128xf32, #tpu.memory_space<vmem>>) attributes {dimension_semantics = [#tpu.dimension_semantics<parallel>], iteration_bounds = array<i64: 2>, scalar_prefetch = 0 : i64, scratch_operands = 0 : i64, tpu.core_type = #tpu.core_type<tc>, window_params = [{transform_indices = @transform_0, window_bounds = array<i64: 128, 512>}, {pipeline_mode = #tpu.pipeline_mode<synchronous>, transform_indices = @transform_1, window_bounds = array<i64: 512, 128>}, {pipeline_mode = #tpu.pipeline_mode<synchronous>, transform_indices = @transform_2, window_bounds = array<i64: 1, 128>}, {transform_indices = @transform_3, window_bounds = array<i64: 128, 128>}, {pipeline_mode = #tpu.pipeline_mode<synchronous>, transform_indices = @transform_4, window_bounds = array<i64: 1, 128>}, {pipeline_mode = #tpu.pipeline_mode<synchronous>, transform_indices = @transform_5, window_bounds = array<i64: 1, 128>}, {transform_indices = @transform_6, window_bounds = array<i64: 128, 128>}]} {
    %c0 = arith.constant 0 : index
    %c0_0 = arith.constant 0 : index
    %0 = vector.load %arg1[%c0, %c0_0] : memref<128x512xbf16, #tpu.memory_space<vmem>>, vector<128x512xbf16>
    %c0_1 = arith.constant 0 : index
    %c0_2 = arith.constant 0 : index
    %1 = vector.load %arg2[%c0_1, %c0_2] : memref<512x128xbf16, #tpu.memory_space<vmem>>, vector<512x128xbf16>
    %cst = arith.constant dense<0.000000e+00> : vector<128x128xf32>
    %2 = tpu.matmul %0, %1, %cst {dimension_numbers = #tpu.dot_dimension_numbers<[1], [0], [0], [1], [0, 0, 1, 1], [], []>} : vector<128x512xbf16>, vector<512x128xbf16>, vector<128x128xf32> -> vector<128x128xf32>
    %c0_3 = arith.constant 0 : index
    %c0_4 = arith.constant 0 : index
    %3 = vector.load %arg3[%c0_3, %c0_4] : memref<1x128xf32, #tpu.memory_space<vmem>>, vector<1x128xf32>
    %4 = vector.broadcast %3 : vector<1x128xf32> to vector<128x128xf32>
    %5 = arith.addf %2, %4 : vector<128x128xf32>
    %c0_5 = arith.constant 0 : index
    %c0_6 = arith.constant 0 : index
    %6 = vector.load %arg4[%c0_5, %c0_6] : memref<128x128xf32, #tpu.memory_space<vmem>>, vector<128x128xf32>
    %7 = arith.addf %5, %6 : vector<128x128xf32>
    %cst_7 = arith.constant dense<0.000000e+00> : vector<128xf32>
    %8 = vector.multi_reduction <add>, %7, %cst_7 [1] : vector<128x128xf32> to vector<128xf32>
    %9 = vector.shape_cast %8 : vector<128xf32> to vector<128x1xf32>
    %cst_8 = arith.constant 1.280000e+02 : f32
    %10 = vector.broadcast %cst_8 : f32 to vector<128x1xf32>
    %11 = arith.divf %9, %10 : vector<128x1xf32>
    %12 = vector.broadcast %11 : vector<128x1xf32> to vector<128x128xf32>
    %13 = arith.subf %7, %12 : vector<128x128xf32>
    %14 = arith.mulf %13, %13 : vector<128x128xf32>
    %cst_9 = arith.constant dense<0.000000e+00> : vector<128xf32>
    %15 = vector.multi_reduction <add>, %14, %cst_9 [1] : vector<128x128xf32> to vector<128xf32>
    %16 = vector.shape_cast %15 : vector<128xf32> to vector<128x1xf32>
    %cst_10 = arith.constant 1.280000e+02 : f32
    %17 = vector.broadcast %cst_10 : f32 to vector<128x1xf32>
    %18 = arith.divf %16, %17 : vector<128x1xf32>
    %cst_11 = arith.constant 9.99999996E-13 : f32
    %19 = vector.broadcast %cst_11 : f32 to vector<128x1xf32>
    %20 = arith.addf %18, %19 : vector<128x1xf32>
    %21 = math.rsqrt %20 : vector<128x1xf32>
    %22 = vector.broadcast %21 : vector<128x1xf32> to vector<128x128xf32>
    %23 = arith.mulf %13, %22 : vector<128x128xf32>
    %c0_12 = arith.constant 0 : index
    %c0_13 = arith.constant 0 : index
    %24 = vector.load %arg5[%c0_12, %c0_13] : memref<1x128xf32, #tpu.memory_space<vmem>>, vector<1x128xf32>
    %25 = vector.broadcast %24 : vector<1x128xf32> to vector<128x128xf32>
    %26 = arith.mulf %23, %25 : vector<128x128xf32>
    %c0_14 = arith.constant 0 : index
    %c0_15 = arith.constant 0 : index
    %27 = vector.load %arg6[%c0_14, %c0_15] : memref<1x128xf32, #tpu.memory_space<vmem>>, vector<1x128xf32>
    %28 = vector.broadcast %27 : vector<1x128xf32> to vector<128x128xf32>
    %29 = arith.addf %26, %28 : vector<128x128xf32>
    %c0_16 = arith.constant 0 : index
    %c0_17 = arith.constant 0 : index
    %30 = vector.load %arg7[%c0_16, %c0_17] : memref<128x128xf32, #tpu.memory_space<vmem>>, vector<128x128xf32>
    tpu.vector_store %arg7[%c0_16, %c0_17], %29 {strides = array<i32>} : memref<128x128xf32, #tpu.memory_space<vmem>>, vector<128x128xf32>,
    return
  }
  func.func @transform_0(%arg0: i32) -> (i32, i32) {
    %c0_i32 = arith.constant 0 : i32
    %c0_i32_0 = arith.constant 0 : i32
    return %arg0, %c0_i32 : i32, i32
  }
  func.func @transform_1(%arg0: i32) -> (i32, i32) {
    %c0_i32 = arith.constant 0 : i32
    %c0_i32_0 = arith.constant 0 : i32
    %c0_i32_1 = arith.constant 0 : i32
    return %c0_i32, %c0_i32_0 : i32, i32
  }
  func.func @transform_2(%arg0: i32) -> (i32, i32) {
    %c0_i32 = arith.constant 0 : i32
    %c0_i32_0 = arith.constant 0 : i32
    %c0_i32_1 = arith.constant 0 : i32
    return %c0_i32, %c0_i32_0 : i32, i32
  }
  func.func @transform_3(%arg0: i32) -> (i32, i32) {
    %c0_i32 = arith.constant 0 : i32
    %c0_i32_0 = arith.constant 0 : i32
    return %arg0, %c0_i32 : i32, i32
  }
  func.func @transform_4(%arg0: i32) -> (i32, i32) {
    %c0_i32 = arith.constant 0 : i32
    %c0_i32_0 = arith.constant 0 : i32
    %c0_i32_1 = arith.constant 0 : i32
    return %c0_i32, %c0_i32_0 : i32, i32
  }
  func.func @transform_5(%arg0: i32) -> (i32, i32) {
    %c0_i32 = arith.constant 0 : i32
    %c0_i32_0 = arith.constant 0 : i32
    %c0_i32_1 = arith.constant 0 : i32
    return %c0_i32, %c0_i32_0 : i32, i32
  }
  func.func @transform_6(%arg0: i32) -> (i32, i32) {
    %c0_i32 = arith.constant 0 : i32
    %c0_i32_0 = arith.constant 0 : i32
    return %arg0, %c0_i32 : i32, i32
  }
}

module attributes {stable_mosaic.version = 11 : i64} {
  func.func @_bert_output_kernel(%arg0: i32, %arg1: memref<128x512xbf16, #tpu.memory_space<vmem>>, %arg2: memref<512x128xbf16, #tpu.memory_space<vmem>>, %arg3: memref<1x128xf32, #tpu.memory_space<vmem>>, %arg4: memref<128x128xf32, #tpu.memory_space<vmem>>, %arg5: memref<1x128xf32, #tpu.memory_space<vmem>>, %arg6: memref<1x128xf32, #tpu.memory_space<vmem>>, %arg7: memref<128x128xf32, #tpu.memory_space<vmem>>) attributes {dimension_semantics = [#tpu.dimension_semantics<parallel>], iteration_bounds = array<i64: 2>, scalar_prefetch = 0 : i64, scratch_operands = 0 : i64, tpu.core_type = #tpu.core_type<tc>, window_params = [{transform_indices = @transform_0, window_bounds = array<i64: 128, 512>}, {pipeline_mode = #tpu.pipeline_mode<synchronous>, transform_indices = @transform_1, window_bounds = array<i64: 512, 128>}, {pipeline_mode = #tpu.pipeline_mode<synchronous>, transform_indices = @transform_2, window_bounds = array<i64: 1, 128>}, {transform_indices = @transform_3, window_bounds = array<i64: 128, 128>}, {pipeline_mode = #tpu.pipeline_mode<synchronous>, transform_indices = @transform_4, window_bounds = array<i64: 1, 128>}, {pipeline_mode = #tpu.pipeline_mode<synchronous>, transform_indices = @transform_5, window_bounds = array<i64: 1, 128>}, {transform_indices = @transform_6, window_bounds = array<i64: 128, 128>}]} {
    %c0 = arith.constant 0 : index
    %c0_0 = arith.constant 0 : index
    %0 = vector.load %arg1[%c0, %c0_0] : memref<128x512xbf16, #tpu.memory_space<vmem>>, vector<128x512xbf16>
    %c0_1 = arith.constant 0 : index
    %c0_2 = arith.constant 0 : index
    %1 = vector.load %arg2[%c0_1, %c0_2] : memref<512x128xbf16, #tpu.memory_space<vmem>>, vector<512x128xbf16>
    %cst = arith.constant dense<0.000000e+00> : vector<128x128xf32>
    %2 = tpu.matmul %0, %1, %cst {dimension_numbers = #tpu.dot_dimension_numbers<[1], [0], [0], [1], [0, 0, 1, 1], [], []>} : vector<128x512xbf16>, vector<512x128xbf16>, vector<128x128xf32> -> vector<128x128xf32>
    %c0_3 = arith.constant 0 : index
    %c0_4 = arith.constant 0 : index
    %3 = vector.load %arg3[%c0_3, %c0_4] : memref<1x128xf32, #tpu.memory_space<vmem>>, vector<1x128xf32>
    %4 = vector.broadcast %3 : vector<1x128xf32> to vector<128x128xf32>
    %5 = arith.addf %2, %4 : vector<128x128xf32>
    %c0_5 = arith.constant 0 : index
    %c0_6 = arith.constant 0 : index
    %6 = vector.load %arg4[%c0_5, %c0_6] : memref<128x128xf32, #tpu.memory_space<vmem>>, vector<128x128xf32>
    %7 = arith.addf %5, %6 : vector<128x128xf32>
    %cst_7 = arith.constant dense<0.000000e+00> : vector<128xf32>
    %8 = vector.multi_reduction <add>, %7, %cst_7 [1] : vector<128x128xf32> to vector<128xf32>
    %9 = vector.shape_cast %8 : vector<128xf32> to vector<128x1xf32>
    %cst_8 = arith.constant 1.280000e+02 : f32
    %10 = vector.broadcast %cst_8 : f32 to vector<128x1xf32>
    %11 = arith.divf %9, %10 : vector<128x1xf32>
    %12 = vector.broadcast %11 : vector<128x1xf32> to vector<128x128xf32>
    %13 = arith.subf %7, %12 : vector<128x128xf32>
    %14 = arith.mulf %13, %13 : vector<128x128xf32>
    %cst_9 = arith.constant dense<0.000000e+00> : vector<128xf32>
    %15 = vector.multi_reduction <add>, %14, %cst_9 [1] : vector<128x128xf32> to vector<128xf32>
    %16 = vector.shape_cast %15 : vector<128xf32> to vector<128x1xf32>
    %cst_10 = arith.constant 1.280000e+02 : f32
    %17 = vector.broadcast %cst_10 : f32 to vector<128x1xf32>
    %18 = arith.divf %16, %17 : vector<128x1xf32>
    %cst_11 = arith.constant 9.99999996E-13 : f32
    %19 = vector.broadcast %cst_11 : f32 to vector<128x1xf32>
    %20 = arith.addf %18, %19 : vector<128x1xf32>
    %21 = math.rsqrt %20 : vector<128x1xf32>
    %22 = vector.broadcast %21 : vector<128x1xf32> to vector<128x128xf32>
    %23 = arith.mulf %13, %22 : vector<128x128xf32>
    %c0_12 = arith.constant 0 : index
    %c0_13 = arith.constant 0 : index
    %24 = vector.load %arg5[%c0_12, %c0_13] : memref<1x128xf32, #tpu.memory_space<vmem>>, vector<1x128xf32>
    %25 = vector.broadcast %24 : vector<1x128xf32> to vector<128x128xf32>
    %26 = arith.mulf %23, %25 : vector<128x128xf32>
    %c0_14 = arith.constant 0 : index
    %c0_15 = arith.constant 0 : index
    %27 = vector.load %arg6[%c0_14, %c0_15] : memref<1x128xf32, #tpu.memory_space<vmem>>, vector<1x128xf32>
    %28 = vector.broadcast %27 : vector<1x128xf32> to vector<128x128xf32>
    %29 = arith.addf %26, %28 : vector<128x128xf32>
    %c0_16 = arith.constant 0 : index
    %c0_17 = arith.constant 0 : index
    %30 = vector.load %arg7[%c0_16, %c0_17] : memref<128x128xf32, #tpu.memory_space<vmem>>, vector<128x128xf32>
    tpu.vector_store %arg7[%c0_16, %c0_17], %29 {strides = array<i32>} : memref<128x128xf32, #tpu.memory_space<vmem>>, vector<128x128xf32>,
    return
  }
  func.func @transform_0(%arg0: i32) -> (i32, i32) {
    %c0_i32 = arith.constant 0 : i32
    %c0_i32_0 = arith.constant 0 : i32
    return %arg0, %c0_i32 : i32, i32
  }
  func.func @transform_1(%arg0: i32) -> (i32, i32) {
    %c0_i32 = arith.constant 0 : i32
    %c0_i32_0 = arith.constant 0 : i32
    %c0_i32_1 = arith.constant 0 : i32
    return %c0_i32, %c0_i32_0 : i32, i32
  }
  func.func @transform_2(%arg0: i32) -> (i32, i32) {
    %c0_i32 = arith.constant 0 : i32
    %c0_i32_0 = arith.constant 0 : i32
    %c0_i32_1 = arith.constant 0 : i32
    return %c0_i32, %c0_i32_0 : i32, i32
  }
  func.func @transform_3(%arg0: i32) -> (i32, i32) {
    %c0_i32 = arith.constant 0 : i32
    %c0_i32_0 = arith.constant 0 : i32
    return %arg0, %c0_i32 : i32, i32
  }
  func.func @transform_4(%arg0: i32) -> (i32, i32) {
    %c0_i32 = arith.constant 0 : i32
    %c0_i32_0 = arith.constant 0 : i32
    %c0_i32_1 = arith.constant 0 : i32
    return %c0_i32, %c0_i32_0 : i32, i32
  }
  func.func @transform_5(%arg0: i32) -> (i32, i32) {
    %c0_i32 = arith.constant 0 : i32
    %c0_i32_0 = arith.constant 0 : i32
    %c0_i32_1 = arith.constant 0 : i32
    return %c0_i32, %c0_i32_0 : i32, i32
  }
  func.func @transform_6(%arg0: i32) -> (i32, i32) {
    %c0_i32 = arith.constant 0 : i32
    %c0_i32_0 = arith.constant 0 : i32
    return %arg0, %c0_i32 : i32, i32
  }
}

</mosaic_0001>

<llo_original>
// kernel: _bert_output_forward_impl.1
$region0: #{_bert_output_forward_impl.1}
  #allocation0 [shape = 'u32[]', space=smem, size = 0x4, offset = 0x4, fixed_abs, tag = 'smem constant byte address 0x4 - core index']
  #allocation1 [shape = 'u32[144,128]{1,0:T(1,128)}', space=vmem, size = 0x12000, scoped, tag = 'internal scratch']
  %s0 = inlined_call_operand.hbm [shape: bf16[256,512], index: 0, kind: input, shape index: {}]
  %s1 = inlined_call_operand.hbm [shape: bf16[512,128], index: 1, kind: input, shape index: {}]
  %s2 = inlined_call_operand.vmem [shape: f32[1,128], index: 2, kind: input, shape index: {}]
  %s3 = inlined_call_operand.hbm [shape: f32[256,128], index: 3, kind: input, shape index: {}]
  %s4 = inlined_call_operand.vmem [shape: f32[1,128], index: 4, kind: input, shape index: {}]
  %s5 = inlined_call_operand.vmem [shape: f32[1,128], index: 5, kind: input, shape index: {}]
  %s6 = inlined_call_operand.hbm [shape: f32[256,128], index: 6, kind: output, shape index: {}]
  %s7 = sld [smem:[#allocation0]]
  $region69: #{_bert_output_forward_impl.1} parent=0
    _
  %s9 = ssub.s32 1, %s7
  %s10 = scalar_select 0, %s9, %s7
  $region1: #{_bert_output_forward_impl.1} parent=0
    #allocation2 [shape = 'u8[262144]{0}', space=vmem, size = 0x40000, scoped, tag = 'input window, operand 0']
    #allocation3 [shape = 's32[2]{0}', space=sflag, size = 0x8, scoped, tag = 'scoped memory for _bert_output_forward_impl.1']
    #allocation4 [shape = 's32[2]{0}', space=sflag, size = 0x8, scoped, tag = 'scoped memory for _bert_output_forward_impl.1']
    #allocation5 [shape = 'u8[131072]{0}', space=vmem, size = 0x20000, scoped, tag = 'input window, operand 1, single buffered']
    #allocation6 [shape = 's32[1]{0}', space=sflag, size = 0x4, scoped, tag = 'scoped memory for _bert_output_forward_impl.1']
    #allocation7 [shape = 'u8[131072]{0}', space=vmem, size = 0x20000, scoped, tag = 'input window, operand 3']
    #allocation8 [shape = 'u8[131072]{0}', space=vmem, size = 0x20000, scoped, tag = 'output window, operand 0']
    %11 = vsyncpa [#allocation3], 0
    %s12 = scalar_lea.sflag [#allocation3], 1
    %13 = vsyncpa %s12, 0
    %14 = vsyncpa [#allocation6], 0
    %15 = vsyncpa [#allocation4], 0
    %s16 = scalar_lea.sflag [#allocation4], 1
    %17 = vsyncpa %s16, 0
    loop: start=0, step=1, limit=4
    $region2: #{_bert_output_forward_impl.1} parent=1 // loop_pre_header
      _
    $region3: #{_bert_output_forward_impl.1} parent=1 // loop_header
      %s19 = sphi 0, %s23
      %p20 = scmp.ge.s32.totalorder %s19, 4
      %s29 = sphi 0, %s31
      %s32 = sphi 0, %s29
      %s33 = sphi 0, %s32
      %s49 = sphi 0, %s33
      %s53 = sphi 0, %s53
      %s55 = sphi 0, %s53
      %s56 = sphi 0, %s55
      %s70 = sphi 0, %s56
      %s74 = sphi 0, %s74
      %s76 = sphi 0, %s74
      %s77 = sphi 0, %s76
      %s91 = sphi 0, %s77
      %s97 = sphi 0, %s99
      %s100 = sphi 0, %s97
      %s101 = sphi 0, %s100
      %s117 = sphi 0, %s101
      %s121 = sphi 0, %s121
      %s123 = sphi 0, %s121
      %s124 = sphi 0, %s123
      %s138 = sphi 0, %s124
      %s142 = sphi 0, %s142
      %s144 = sphi 0, %s142
      %s145 = sphi 0, %s144
      %s159 = sphi 0, %s145
      %s165 = sphi 0, %s167
      %s168 = sphi 0, %s165
      %s169 = sphi 0, %s168
      %s185 = sphi 0, %s169
    $region4: #{_bert_output_forward_impl.1} parent=1 // loop_header_branch
      %22 = sbr.rel (%p20) target = $region8
    $region5: #{_bert_output_forward_impl.1} parent=1 // loop_body
      %s24 = ssub.s32 %s19, 1
      %s25 = ssub.s32 %s19, 2
      %s26 = sadd.s32 %s19, 1
      %s27 = ssub.s32 %s19, %s26
      %p28 = scmp.eq.s32.totalorder %s27, 0
      %s30 = sadd.s32 %s29, 1
      %s31 = scalar_select %p28, %s29, %s30
      %p34 = pneg %p28
      %p35 = scmp.eq.s32.totalorder %s19, 1
      %p36 = por %p34, %p35
      %p37 = scmp.ne.s32.totalorder %s29, %s32
      %p38 = scmp.eq.s32.totalorder %s19, 0
      %p39 = por %p37, %p38
      %p40 = scmp.ne.s32.totalorder %s29, %s32
      %p41 = scmp.eq.s32.totalorder %s24, 1
      %p42 = por %p40, %p41
      %p43 = scmp.ne.s32.totalorder %s32, %s33
      %p44 = scmp.eq.s32.totalorder %s24, 0
      %p45 = por %p43, %p44
      %p46 = scmp.ne.s32.totalorder %s32, %s33
      %p47 = scmp.eq.s32.totalorder %s25, 1
      %p48 = por %p46, %p47
      %p50 = scmp.ne.s32.totalorder %s33, %s49
      %p51 = scmp.eq.s32.totalorder %s25, 0
      %p52 = por %p50, %p51
      %s54 = sadd.s32 %s53, 1
      %p57 = scmp.eq.s32.totalorder %s19, 1
      %p58 = scmp.ne.s32.totalorder %s53, %s55
      %p59 = scmp.eq.s32.totalorder %s19, 0
      %p60 = por %p58, %p59
      %p61 = scmp.ne.s32.totalorder %s53, %s55
      %p62 = scmp.eq.s32.totalorder %s24, 1
      %p63 = por %p61, %p62
      %p64 = scmp.ne.s32.totalorder %s55, %s56
      %p65 = scmp.eq.s32.totalorder %s24, 0
      %p66 = por %p64, %p65
      %p67 = scmp.ne.s32.totalorder %s55, %s56
      %p68 = scmp.eq.s32.totalorder %s25, 1
      %p69 = por %p67, %p68
      %p71 = scmp.ne.s32.totalorder %s56, %s70
      %p72 = scmp.eq.s32.totalorder %s25, 0
      %p73 = por %p71, %p72
      %s75 = sadd.s32 %s74, 1
      %p78 = scmp.eq.s32.totalorder %s19, 1
      %p79 = scmp.ne.s32.totalorder %s74, %s76
      %p80 = scmp.eq.s32.totalorder %s19, 0
      %p81 = por %p79, %p80
      %p82 = scmp.ne.s32.totalorder %s74, %s76
      %p83 = scmp.eq.s32.totalorder %s24, 1
      %p84 = por %p82, %p83
      %p85 = scmp.ne.s32.totalorder %s76, %s77
      %p86 = scmp.eq.s32.totalorder %s24, 0
      %p87 = por %p85, %p86
      %p88 = scmp.ne.s32.totalorder %s76, %s77
      %p89 = scmp.eq.s32.totalorder %s25, 1
      %p90 = por %p88, %p89
      %p92 = scmp.ne.s32.totalorder %s77, %s91
      %p93 = scmp.eq.s32.totalorder %s25, 0
      %p94 = por %p92, %p93
      %s95 = ssub.s32 %s19, %s26
      %p96 = scmp.eq.s32.totalorder %s95, 0
      %s98 = sadd.s32 %s97, 1
      %s99 = scalar_select %p96, %s97, %s98
      %p102 = pneg %p96
      %p103 = scmp.eq.s32.totalorder %s19, 1
      %p104 = por %p102, %p103
      %p105 = scmp.ne.s32.totalorder %s97, %s100
      %p106 = scmp.eq.s32.totalorder %s19, 0
      %p107 = por %p105, %p106
      %p108 = scmp.ne.s32.totalorder %s97, %s100
      %p109 = scmp.eq.s32.totalorder %s24, 1
      %p110 = por %p108, %p109
      %p111 = scmp.ne.s32.totalorder %s100, %s101
      %p112 = scmp.eq.s32.totalorder %s24, 0
      %p113 = por %p111, %p112
      %p114 = scmp.ne.s32.totalorder %s100, %s101
      %p115 = scmp.eq.s32.totalorder %s25, 1
      %p116 = por %p114, %p115
      %p118 = scmp.ne.s32.totalorder %s101, %s117
      %p119 = scmp.eq.s32.totalorder %s25, 0
      %p120 = por %p118, %p119
      %s122 = sadd.s32 %s121, 1
      %p125 = scmp.eq.s32.totalorder %s19, 1
      %p126 = scmp.ne.s32.totalorder %s121, %s123
      %p127 = scmp.eq.s32.totalorder %s19, 0
      %p128 = por %p126, %p127
      %p129 = scmp.ne.s32.totalorder %s121, %s123
      %p130 = scmp.eq.s32.totalorder %s24, 1
      %p131 = por %p129, %p130
      %p132 = scmp.ne.s32.totalorder %s123, %s124
      %p133 = scmp.eq.s32.totalorder %s24, 0
      %p134 = por %p132, %p133
      %p135 = scmp.ne.s32.totalorder %s123, %s124
      %p136 = scmp.eq.s32.totalorder %s25, 1
      %p137 = por %p135, %p136
      %p139 = scmp.ne.s32.totalorder %s124, %s138
      %p140 = scmp.eq.s32.totalorder %s25, 0
      %p141 = por %p139, %p140
      %s143 = sadd.s32 %s142, 1
      %p146 = scmp.eq.s32.totalorder %s19, 1
      %p147 = scmp.ne.s32.totalorder %s142, %s144
      %p148 = scmp.eq.s32.totalorder %s19, 0
      %p149 = por %p147, %p148
      %p150 = scmp.ne.s32.totalorder %s142, %s144
      %p151 = scmp.eq.s32.totalorder %s24, 1
      %p152 = por %p150, %p151
      %p153 = scmp.ne.s32.totalorder %s144, %s145
      %p154 = scmp.eq.s32.totalorder %s24, 0
      %p155 = por %p153, %p154
      %p156 = scmp.ne.s32.totalorder %s144, %s145
      %p157 = scmp.eq.s32.totalorder %s25, 1
      %p158 = por %p156, %p157
      %p160 = scmp.ne.s32.totalorder %s145, %s159
      %p161 = scmp.eq.s32.totalorder %s25, 0
      %p162 = por %p160, %p161
      %s163 = ssub.s32 %s19, %s26
      %p164 = scmp.eq.s32.totalorder %s163, 0
      %s166 = sadd.s32 %s165, 1
      %s167 = scalar_select %p164, %s165, %s166
      %p170 = pneg %p164
      %p171 = scmp.eq.s32.totalorder %s19, 1
      %p172 = por %p170, %p171
      %p173 = scmp.ne.s32.totalorder %s165, %s168
      %p174 = scmp.eq.s32.totalorder %s19, 0
      %p175 = por %p173, %p174
      %p176 = scmp.ne.s32.totalorder %s165, %s168
      %p177 = scmp.eq.s32.totalorder %s24, 1
      %p178 = por %p176, %p177
      %p179 = scmp.ne.s32.totalorder %s168, %s169
      %p180 = scmp.eq.s32.totalorder %s24, 0
      %p181 = por %p179, %p180
      %p182 = scmp.ne.s32.totalorder %s168, %s169
      %p183 = scmp.eq.s32.totalorder %s25, 1
      %p184 = por %p182, %p183
      %p186 = scmp.ne.s32.totalorder %s169, %s185
      %p187 = scmp.eq.s32.totalorder %s25, 0
      %p188 = por %p186, %p187
      %p189 = scmp.le.s32.totalorder 1, %s19
      %p190 = scmp.lt.s32.totalorder %s19, 3
      %p191 = pnand %p189, %p190
      %p192 = pneg %p191
      // Predicated region
      $region9: #{_bert_output_forward_impl.1} parent=5 // pred_check
        _
      $region10: #{_bert_output_forward_impl.1} parent=5 // pred_check_branch
        %194 = sbr.rel (%p191) target = $region12
      $region11: #{_bert_output_forward_impl.1} parent=5 // pred_region
        %s195 = ssub.s32 %s19, 1
        // Predicated region
        $region13: #{_bert_output_forward_impl.1} parent=11 // pred_check
          %p196 = pneg %p66
        $region14: #{_bert_output_forward_impl.1} parent=11 // pred_check_branch
          %198 = sbr.rel (%p196) target = $region16
        $region15: #{_bert_output_forward_impl.1} parent=11 // pred_region
          %s200 = ssub.s32 4096, 4096
          %201 = vsyncadd [#allocation6], %s200
          %s202 = sshll.u32 [#allocation5], 4
          %s203 = int_to_ptr.vmem [resolvable:$true] %s202
          %208 = dma.hbm_to_vmem [thread:$0]  %s1, 4096, %s203, [#allocation6], 64, 64, 4
        $region16: #{_bert_output_forward_impl.1} parent=11 // pred_fallthru
          _
        // Predicated region
        $region17: #{_bert_output_forward_impl.1} parent=11 // pred_check
          %p209 = pneg %p87
        $region18: #{_bert_output_forward_impl.1} parent=11 // pred_check_branch
          %211 = sbr.rel (%p209) target = $region20
        $region19: #{_bert_output_forward_impl.1} parent=11 // pred_region
          _
        $region20: #{_bert_output_forward_impl.1} parent=11 // pred_fallthru
          _
        // Predicated region
        $region21: #{_bert_output_forward_impl.1} parent=11 // pred_check
          %p212 = pneg %p134
        $region22: #{_bert_output_forward_impl.1} parent=11 // pred_check_branch
          %214 = sbr.rel (%p212) target = $region24
        $region23: #{_bert_output_forward_impl.1} parent=11 // pred_region
          _
        $region24: #{_bert_output_forward_impl.1} parent=11 // pred_fallthru
          _
        // Predicated region
        $region25: #{_bert_output_forward_impl.1} parent=11 // pred_check
          %p215 = pneg %p155
        $region26: #{_bert_output_forward_impl.1} parent=11 // pred_check_branch
          %217 = sbr.rel (%p215) target = $region28
        $region27: #{_bert_output_forward_impl.1} parent=11 // pred_region
          _
        $region28: #{_bert_output_forward_impl.1} parent=11 // pred_fallthru
          _
      $region12: #{_bert_output_forward_impl.1} parent=5 // pred_fallthru
        _
      %p218 = scmp.lt.s32.totalorder %s19, 2
      // Predicated region
      $region29: #{_bert_output_forward_impl.1} parent=5 // pred_check
        %p219 = pneg %p218
      $region30: #{_bert_output_forward_impl.1} parent=5 // pred_check_branch
        %221 = sbr.rel (%p219) target = $region32
      $region31: #{_bert_output_forward_impl.1} parent=5 // pred_region
        // Predicated region
        $region33: #{_bert_output_forward_impl.1} parent=31 // pred_check
          %p222 = pneg %p39
        $region34: #{_bert_output_forward_impl.1} parent=31 // pred_check_branch
          %224 = sbr.rel (%p222) target = $region36
        $region35: #{_bert_output_forward_impl.1} parent=31 // pred_region
          %s225 = sand.u32 %s19, 1
          %s226 = scalar_lea.sflag [#allocation3], %s225
          %s227 = sand.u32 %s29, 1
          %s228 = smul.addr %s227, 256
          %s229 = scalar_lea.vmem [#allocation2], %s228
          %s230 = smul.u32 16, %s19
          %s232 = ssub.s32 4096, 4096
          %233 = vsyncadd %s226, %s232
          %s234 = smul.addr %s230, 4
          %s235 = smul.addr %s234, 64
          %s236 = scalar_lea.hbm %s0, %s235
          %s237 = sshll.u32 %s229, 4
          %s238 = int_to_ptr.vmem [resolvable:$true] %s237
          %243 = dma.hbm_to_vmem [thread:$0]  %s236, 4096, %s238, %s226, 256, 256, 16
        $region36: #{_bert_output_forward_impl.1} parent=31 // pred_fallthru
          _
        // Predicated region
        $region37: #{_bert_output_forward_impl.1} parent=31 // pred_check
          %p244 = pneg %p107
        $region38: #{_bert_output_forward_impl.1} parent=31 // pred_check_branch
          %246 = sbr.rel (%p244) target = $region40
        $region39: #{_bert_output_forward_impl.1} parent=31 // pred_region
          %s247 = sand.u32 %s19, 1
          %s248 = scalar_lea.sflag [#allocation3], %s247
          %s249 = sand.u32 %s97, 1
          %s250 = smul.addr %s249, 128
          %s251 = scalar_lea.vmem [#allocation7], %s250
          %s252 = smul.u32 16, %s19
          %s254 = ssub.s32 2048, 2048
          %255 = vsyncadd %s248, %s254
          %s256 = smul.addr %s252, 128
          %s257 = scalar_lea.hbm %s3, %s256
          %s258 = sshll.u32 %s251, 4
          %s259 = int_to_ptr.vmem [resolvable:$true] %s258
          %264 = dma.hbm_to_vmem [thread:$0]  %s257, 2048, %s259, %s248, 128, 128, 8
        $region40: #{_bert_output_forward_impl.1} parent=31 // pred_fallthru
          _
      $region32: #{_bert_output_forward_impl.1} parent=5 // pred_fallthru
        _
      %p265 = scmp.le.s32.totalorder 1, %s19
      %p266 = scmp.lt.s32.totalorder %s19, 3
      %p267 = pnand %p265, %p266
      %p268 = pneg %p267
      // Predicated region
      $region41: #{_bert_output_forward_impl.1} parent=5 // pred_check
        _
      $region42: #{_bert_output_forward_impl.1} parent=5 // pred_check_branch
        %270 = sbr.rel (%p267) target = $region44
      $region43: #{_bert_output_forward_impl.1} parent=5 // pred_region
        %s271 = ssub.s32 %s19, 1
        %s272 = sand.u32 %s24, 1
        %s273 = scalar_lea.sflag [#allocation3], %s272
        %s274 = sand.u32 %s32, 1
        %s275 = smul.addr %s274, 256
        %s276 = scalar_lea.vmem [#allocation2], %s275
        // Predicated region
        $region45: #{_bert_output_forward_impl.1} parent=43 // pred_check
          %p277 = pneg %p45
        $region46: #{_bert_output_forward_impl.1} parent=43 // pred_check_branch
          %279 = sbr.rel (%p277) target = $region48
        $region47: #{_bert_output_forward_impl.1} parent=43 // pred_region
          %280 = dma.done %s273, 4096
        $region48: #{_bert_output_forward_impl.1} parent=43 // pred_fallthru
          _
        // Predicated region
        $region49: #{_bert_output_forward_impl.1} parent=43 // pred_check
          %p281 = pneg %p66
        $region50: #{_bert_output_forward_impl.1} parent=43 // pred_check_branch
          %283 = sbr.rel (%p281) target = $region52
        $region51: #{_bert_output_forward_impl.1} parent=43 // pred_region
          %284 = dma.done [#allocation6], 4096
        $region52: #{_bert_output_forward_impl.1} parent=43 // pred_fallthru
          _
        %s285 = sand.u32 %s24, 1
        %s286 = scalar_lea.sflag [#allocation3], %s285
        %s287 = sand.u32 %s100, 1
        %s288 = smul.addr %s287, 128
        %s289 = scalar_lea.vmem [#allocation7], %s288
        // Predicated region
        $region53: #{_bert_output_forward_impl.1} parent=43 // pred_check
          %p290 = pneg %p113
        $region54: #{_bert_output_forward_impl.1} parent=43 // pred_check_branch
          %292 = sbr.rel (%p290) target = $region56
        $region55: #{_bert_output_forward_impl.1} parent=43 // pred_region
          %293 = dma.done %s286, 2048
        $region56: #{_bert_output_forward_impl.1} parent=43 // pred_fallthru
          _
        %s294 = sand.u32 %s24, 1
        %s295 = scalar_lea.sflag [#allocation3], %s294
        %s296 = sand.u32 %s32, 1
        %s297 = smul.addr %s296, 256
        %s298 = scalar_lea.vmem [#allocation2], %s297
        %p299 = pneg %p45
        %p300 = pneg %p42
        %p301 = pneg %p66
        %p302 = pneg %p63
        %p303 = pneg %p87
        %p304 = pneg %p84
        %s305 = sand.u32 %s24, 1
        %s306 = scalar_lea.sflag [#allocation3], %s305
        %s307 = sand.u32 %s100, 1
        %s308 = smul.addr %s307, 128
        %s309 = scalar_lea.vmem [#allocation7], %s308
        %p310 = pneg %p113
        %p311 = pneg %p110
        %p312 = pneg %p134
        %p313 = pneg %p131
        %p314 = pneg %p155
        %p315 = pneg %p152
        %p316 = pneg %p181
        %p317 = pneg %p178
        %s318 = sand.u32 %s168, 1
        %s319 = scalar_lea.sflag [#allocation4], %s318
        %s320 = sand.u32 %s168, 1
        %s321 = smul.addr %s320, 128
        %s322 = scalar_lea.vmem [#allocation8], %s321
        %s323 = smul.u32 16, %s24
        %s324 = smul.u32 16, %s24
        %s325 = smul.u32 16, %s24
        %v327 = vld [vmem:[%s276] sm:$0xff]
        %v328 = vld [vmem:[%s276 + $0x8] sm:$0xff]
        %v329 = vld [vmem:[%s276 + $0x10] sm:$0xff]
        %v330 = vld [vmem:[%s276 + $0x18] sm:$0xff]
        %v331 = vld [vmem:[%s276 + $0x20] sm:$0xff]
        %v332 = vld [vmem:[%s276 + $0x28] sm:$0xff]
        %v333 = vld [vmem:[%s276 + $0x30] sm:$0xff]
        %v334 = vld [vmem:[%s276 + $0x38] sm:$0xff]
        %v335 = vld [vmem:[%s276 + $0x40] sm:$0xff]
        %v336 = vld [vmem:[%s276 + $0x48] sm:$0xff]
        %v337 = vld [vmem:[%s276 + $0x50] sm:$0xff]
        %v338 = vld [vmem:[%s276 + $0x58] sm:$0xff]
        %v339 = vld [vmem:[%s276 + $0x60] sm:$0xff]
        %v340 = vld [vmem:[%s276 + $0x68] sm:$0xff]
        %v341 = vld [vmem:[%s276 + $0x70] sm:$0xff]
        %v342 = vld [vmem:[%s276 + $0x78] sm:$0xff]
        %v343 = vld [vmem:[%s276 + $0x80] sm:$0xff]
        %v344 = vld [vmem:[%s276 + $0x88] sm:$0xff]
        %v345 = vld [vmem:[%s276 + $0x90] sm:$0xff]
        %v346 = vld [vmem:[%s276 + $0x98] sm:$0xff]
        %v347 = vld [vmem:[%s276 + $0xa0] sm:$0xff]
        %v348 = vld [vmem:[%s276 + $0xa8] sm:$0xff]
        %v349 = vld [vmem:[%s276 + $0xb0] sm:$0xff]
        %v350 = vld [vmem:[%s276 + $0xb8] sm:$0xff]
        %v351 = vld [vmem:[%s276 + $0xc0] sm:$0xff]
        %v352 = vld [vmem:[%s276 + $0xc8] sm:$0xff]
        %v353 = vld [vmem:[%s276 + $0xd0] sm:$0xff]
        %v354 = vld [vmem:[%s276 + $0xd8] sm:$0xff]
        %v355 = vld [vmem:[%s276 + $0xe0] sm:$0xff]
        %v356 = vld [vmem:[%s276 + $0xe8] sm:$0xff]
        %v357 = vld [vmem:[%s276 + $0xf0] sm:$0xff]
        %v358 = vld [vmem:[%s276 + $0xf8] sm:$0xff]
        %v359 = vld [vmem:[#allocation5] sm:$0xf]
        %v360 = vld [vmem:[#allocation5 + $0x4] sm:$0xf]
        %v361 = vld [vmem:[#allocation5 + $0x8] sm:$0xf]
        %v362 = vld [vmem:[#allocation5 + $0xc] sm:$0xf]
        %v363 = vld [vmem:[#allocation5 + $0x10] sm:$0xf]
        %v364 = vld [vmem:[#allocation5 + $0x14] sm:$0xf]
        %v365 = vld [vmem:[#allocation5 + $0x18] sm:$0xf]
        %v366 = vld [vmem:[#allocation5 + $0x1c] sm:$0xf]
        %v367 = vld [vmem:[#allocation5 + $0x20] sm:$0xf]
        %v368 = vld [vmem:[#allocation5 + $0x24] sm:$0xf]
        %v369 = vld [vmem:[#allocation5 + $0x28] sm:$0xf]
        %v370 = vld [vmem:[#allocation5 + $0x2c] sm:$0xf]
        %v371 = vld [vmem:[#allocation5 + $0x30] sm:$0xf]
        %v372 = vld [vmem:[#allocation5 + $0x34] sm:$0xf]
        %v373 = vld [vmem:[#allocation5 + $0x38] sm:$0xf]
        %v374 = vld [vmem:[#allocation5 + $0x3c] sm:$0xf]
        %v375 = vld [vmem:[#allocation5 + $0x40] sm:$0xf]
        %v376 = vld [vmem:[#allocation5 + $0x44] sm:$0xf]
        %v377 = vld [vmem:[#allocation5 + $0x48] sm:$0xf]
        %v378 = vld [vmem:[#allocation5 + $0x4c] sm:$0xf]
        %v379 = vld [vmem:[#allocation5 + $0x50] sm:$0xf]
        %v380 = vld [vmem:[#allocation5 + $0x54] sm:$0xf]
        %v381 = vld [vmem:[#allocation5 + $0x58] sm:$0xf]
        %v382 = vld [vmem:[#allocation5 + $0x5c] sm:$0xf]
        %v383 = vld [vmem:[#allocation5 + $0x60] sm:$0xf]
        %v384 = vld [vmem:[#allocation5 + $0x64] sm:$0xf]
        %v385 = vld [vmem:[#allocation5 + $0x68] sm:$0xf]
        %v386 = vld [vmem:[#allocation5 + $0x6c] sm:$0xf]
        %v387 = vld [vmem:[#allocation5 + $0x70] sm:$0xf]
        %v388 = vld [vmem:[#allocation5 + $0x74] sm:$0xf]
        %v389 = vld [vmem:[#allocation5 + $0x78] sm:$0xf]
        %v390 = vld [vmem:[#allocation5 + $0x7c] sm:$0xf]
        %v391 = vld [vmem:[#allocation5 + $0x80] sm:$0xf]
        %v392 = vld [vmem:[#allocation5 + $0x84] sm:$0xf]
        %v393 = vld [vmem:[#allocation5 + $0x88] sm:$0xf]
        %v394 = vld [vmem:[#allocation5 + $0x8c] sm:$0xf]
        %v395 = vld [vmem:[#allocation5 + $0x90] sm:$0xf]
        %v396 = vld [vmem:[#allocation5 + $0x94] sm:$0xf]
        %v397 = vld [vmem:[#allocation5 + $0x98] sm:$0xf]
        %v398 = vld [vmem:[#allocation5 + $0x9c] sm:$0xf]
        %v399 = vld [vmem:[#allocation5 + $0xa0] sm:$0xf]
        %v400 = vld [vmem:[#allocation5 + $0xa4] sm:$0xf]
        %v401 = vld [vmem:[#allocation5 + $0xa8] sm:$0xf]
        %v402 = vld [vmem:[#allocation5 + $0xac] sm:$0xf]
        %v403 = vld [vmem:[#allocation5 + $0xb0] sm:$0xf]
        %v404 = vld [vmem:[#allocation5 + $0xb4] sm:$0xf]
        %v405 = vld [vmem:[#allocation5 + $0xb8] sm:$0xf]
        %v406 = vld [vmem:[#allocation5 + $0xbc] sm:$0xf]
        %v407 = vld [vmem:[#allocation5 + $0xc0] sm:$0xf]
        %v408 = vld [vmem:[#allocation5 + $0xc4] sm:$0xf]
        %v409 = vld [vmem:[#allocation5 + $0xc8] sm:$0xf]
        %v410 = vld [vmem:[#allocation5 + $0xcc] sm:$0xf]
        %v411 = vld [vmem:[#allocation5 + $0xd0] sm:$0xf]
        %v412 = vld [vmem:[#allocation5 + $0xd4] sm:$0xf]
        %v413 = vld [vmem:[#allocation5 + $0xd8] sm:$0xf]
        %v414 = vld [vmem:[#allocation5 + $0xdc] sm:$0xf]
        %v415 = vld [vmem:[#allocation5 + $0xe0] sm:$0xf]
        %v416 = vld [vmem:[#allocation5 + $0xe4] sm:$0xf]
        %v417 = vld [vmem:[#allocation5 + $0xe8] sm:$0xf]
        %v418 = vld [vmem:[#allocation5 + $0xec] sm:$0xf]
        %v419 = vld [vmem:[#allocation5 + $0xf0] sm:$0xf]
        %v420 = vld [vmem:[#allocation5 + $0xf4] sm:$0xf]
        %v421 = vld [vmem:[#allocation5 + $0xf8] sm:$0xf]
        %v422 = vld [vmem:[#allocation5 + $0xfc] sm:$0xf]
        %v423 = vld [vmem:[%s2] sm:$0x1]
        %v425 = vlaneseq
        %v426 = vshrl.u32 %v425, 7
        %v427 = vsub.s32 0, %v426
        %v428 = vrot.slane %v423, %v427
        %v462 = vunpack.c.l.b16 %v327
        %v463 = vunpack.c.h.b16 %v327
        %v464 = vunpack.c.l.b16 %v328
        %v465 = vunpack.c.h.b16 %v328
        %v466 = vunpack.c.l.b16 %v329
        %v467 = vunpack.c.h.b16 %v329
        %v468 = vunpack.c.l.b16 %v330
        %v469 = vunpack.c.h.b16 %v330
        %v470 = vunpack.c.l.b16 %v331
        %v471 = vunpack.c.h.b16 %v331
        %v472 = vunpack.c.l.b16 %v332
        %v473 = vunpack.c.h.b16 %v332
        %v474 = vunpack.c.l.b16 %v333
        %v475 = vunpack.c.h.b16 %v333
        %v476 = vunpack.c.l.b16 %v334
        %v477 = vunpack.c.h.b16 %v334
        %v478 = vunpack.c.l.b16 %v335
        %v479 = vunpack.c.h.b16 %v335
        %v480 = vunpack.c.l.b16 %v336
        %v481 = vunpack.c.h.b16 %v336
        %v482 = vunpack.c.l.b16 %v337
        %v483 = vunpack.c.h.b16 %v337
        %v484 = vunpack.c.l.b16 %v338
        %v485 = vunpack.c.h.b16 %v338
        %v486 = vunpack.c.l.b16 %v339
        %v487 = vunpack.c.h.b16 %v339
        %v488 = vunpack.c.l.b16 %v340
        %v489 = vunpack.c.h.b16 %v340
        %v490 = vunpack.c.l.b16 %v341
        %v491 = vunpack.c.h.b16 %v341
        %v492 = vunpack.c.l.b16 %v342
        %v493 = vunpack.c.h.b16 %v342
        %v494 = vunpack.c.l.b16 %v343
        %v495 = vunpack.c.h.b16 %v343
        %v496 = vunpack.c.l.b16 %v344
        %v497 = vunpack.c.h.b16 %v344
        %v498 = vunpack.c.l.b16 %v345
        %v499 = vunpack.c.h.b16 %v345
        %v500 = vunpack.c.l.b16 %v346
        %v501 = vunpack.c.h.b16 %v346
        %v502 = vunpack.c.l.b16 %v347
        %v503 = vunpack.c.h.b16 %v347
        %v504 = vunpack.c.l.b16 %v348
        %v505 = vunpack.c.h.b16 %v348
        %v506 = vunpack.c.l.b16 %v349
        %v507 = vunpack.c.h.b16 %v349
        %v508 = vunpack.c.l.b16 %v350
        %v509 = vunpack.c.h.b16 %v350
        %v510 = vunpack.c.l.b16 %v351
        %v511 = vunpack.c.h.b16 %v351
        %v512 = vunpack.c.l.b16 %v352
        %v513 = vunpack.c.h.b16 %v352
        %v514 = vunpack.c.l.b16 %v353
        %v515 = vunpack.c.h.b16 %v353
        %v516 = vunpack.c.l.b16 %v354
        %v517 = vunpack.c.h.b16 %v354
        %v518 = vunpack.c.l.b16 %v355
        %v519 = vunpack.c.h.b16 %v355
        %v520 = vunpack.c.l.b16 %v356
        %v521 = vunpack.c.h.b16 %v356
        %v522 = vunpack.c.l.b16 %v357
        %v523 = vunpack.c.h.b16 %v357
        %v524 = vunpack.c.l.b16 %v358
        %v525 = vunpack.c.h.b16 %v358
        %v526 = vpack.c.b16 %v466, %v462
        %v527 = vpack.c.b16 %v467, %v463
        %v528 = vpack.c.b16 %v468, %v464
        %v529 = vpack.c.b16 %v469, %v465
        %v530 = vpack.c.b16 %v474, %v470
        %v531 = vpack.c.b16 %v475, %v471
        %v532 = vpack.c.b16 %v476, %v472
        %v533 = vpack.c.b16 %v477, %v473
        %v534 = vpack.c.b16 %v482, %v478
        %v535 = vpack.c.b16 %v483, %v479
        %v536 = vpack.c.b16 %v484, %v480
        %v537 = vpack.c.b16 %v485, %v481
        %v538 = vpack.c.b16 %v490, %v486
        %v539 = vpack.c.b16 %v491, %v487
        %v540 = vpack.c.b16 %v492, %v488
        %v541 = vpack.c.b16 %v493, %v489
        %v542 = vpack.c.b16 %v498, %v494
        %v543 = vpack.c.b16 %v499, %v495
        %v544 = vpack.c.b16 %v500, %v496
        %v545 = vpack.c.b16 %v501, %v497
        %v546 = vpack.c.b16 %v506, %v502
        %v547 = vpack.c.b16 %v507, %v503
        %v548 = vpack.c.b16 %v508, %v504
        %v549 = vpack.c.b16 %v509, %v505
        %v550 = vpack.c.b16 %v514, %v510
        %v551 = vpack.c.b16 %v515, %v511
        %v552 = vpack.c.b16 %v516, %v512
        %v553 = vpack.c.b16 %v517, %v513
        %v554 = vpack.c.b16 %v522, %v518
        %v555 = vpack.c.b16 %v523, %v519
        %v556 = vpack.c.b16 %v524, %v520
        %v557 = vpack.c.b16 %v525, %v521
        %v654 = vunpack.c.l.b16 %v359
        %v655 = vunpack.c.l.b16 %v360
        %v656 = vunpack.c.l.b16 %v361
        %v657 = vunpack.c.l.b16 %v362
        %v658 = vunpack.c.l.b16 %v363
        %v659 = vunpack.c.l.b16 %v364
        %v660 = vunpack.c.l.b16 %v365
        %v661 = vunpack.c.l.b16 %v366
        %v662 = vunpack.c.l.b16 %v367
        %v663 = vunpack.c.l.b16 %v368
        %v664 = vunpack.c.l.b16 %v369
        %v665 = vunpack.c.l.b16 %v370
        %v666 = vunpack.c.l.b16 %v371
        %v667 = vunpack.c.l.b16 %v372
        %v668 = vunpack.c.l.b16 %v373
        %v669 = vunpack.c.l.b16 %v374
        %v670 = vunpack.c.l.b16 %v375
        %v671 = vunpack.c.l.b16 %v376
        %v672 = vunpack.c.l.b16 %v377
        %v673 = vunpack.c.l.b16 %v378
        %v674 = vunpack.c.l.b16 %v379
        %v675 = vunpack.c.l.b16 %v380
        %v676 = vunpack.c.l.b16 %v381
        %v677 = vunpack.c.l.b16 %v382
        %v678 = vunpack.c.l.b16 %v383
        %v679 = vunpack.c.l.b16 %v384
        %v680 = vunpack.c.l.b16 %v385
        %v681 = vunpack.c.l.b16 %v386
        %v682 = vunpack.c.l.b16 %v387
        %v683 = vunpack.c.l.b16 %v388
        %v684 = vunpack.c.l.b16 %v389
        %v685 = vunpack.c.l.b16 %v390
        %v686 = vunpack.c.l.b16 %v391
        %v687 = vunpack.c.l.b16 %v392
        %v688 = vunpack.c.l.b16 %v393
        %v689 = vunpack.c.l.b16 %v394
        %v690 = vunpack.c.l.b16 %v395
        %v691 = vunpack.c.l.b16 %v396
        %v692 = vunpack.c.l.b16 %v397
        %v693 = vunpack.c.l.b16 %v398
        %v694 = vunpack.c.l.b16 %v399
        %v695 = vunpack.c.l.b16 %v400
        %v696 = vunpack.c.l.b16 %v401
        %v697 = vunpack.c.l.b16 %v402
        %v698 = vunpack.c.l.b16 %v403
        %v699 = vunpack.c.l.b16 %v404
        %v700 = vunpack.c.l.b16 %v405
        %v701 = vunpack.c.l.b16 %v406
        %v702 = vunpack.c.l.b16 %v407
        %v703 = vunpack.c.l.b16 %v408
        %v704 = vunpack.c.l.b16 %v409
        %v705 = vunpack.c.l.b16 %v410
        %v706 = vunpack.c.l.b16 %v411
        %v707 = vunpack.c.l.b16 %v412
        %v708 = vunpack.c.l.b16 %v413
        %v709 = vunpack.c.l.b16 %v414
        %v710 = vunpack.c.l.b16 %v415
        %v711 = vunpack.c.l.b16 %v416
        %v712 = vunpack.c.l.b16 %v417
        %v713 = vunpack.c.l.b16 %v418
        %v714 = vunpack.c.l.b16 %v419
        %v715 = vunpack.c.l.b16 %v420
        %v716 = vunpack.c.l.b16 %v421
        %v717 = vunpack.c.l.b16 %v422
        %v718 = vpack.c.b16 %v655, %v654
        %v719 = vpack.c.b16 %v657, %v656
        %v720 = vpack.c.b16 %v659, %v658
        %v721 = vpack.c.b16 %v661, %v660
        %v722 = vpack.c.b16 %v663, %v662
        %v723 = vpack.c.b16 %v665, %v664
        %v724 = vpack.c.b16 %v667, %v666
        %v725 = vpack.c.b16 %v669, %v668
        %v726 = vpack.c.b16 %v671, %v670
        %v727 = vpack.c.b16 %v673, %v672
        %v728 = vpack.c.b16 %v675, %v674
        %v729 = vpack.c.b16 %v677, %v676
        %v730 = vpack.c.b16 %v679, %v678
        %v731 = vpack.c.b16 %v681, %v680
        %v732 = vpack.c.b16 %v683, %v682
        %v733 = vpack.c.b16 %v685, %v684
        %v734 = vpack.c.b16 %v687, %v686
        %v735 = vpack.c.b16 %v689, %v688
        %v736 = vpack.c.b16 %v691, %v690
        %v737 = vpack.c.b16 %v693, %v692
        %v738 = vpack.c.b16 %v695, %v694
        %v739 = vpack.c.b16 %v697, %v696
        %v740 = vpack.c.b16 %v699, %v698
        %v741 = vpack.c.b16 %v701, %v700
        %v742 = vpack.c.b16 %v703, %v702
        %v743 = vpack.c.b16 %v705, %v704
        %v744 = vpack.c.b16 %v707, %v706
        %v745 = vpack.c.b16 %v709, %v708
        %v746 = vpack.c.b16 %v711, %v710
        %v747 = vpack.c.b16 %v713, %v712
        %v748 = vpack.c.b16 %v715, %v714
        %v749 = vpack.c.b16 %v717, %v716
        %782 = vmatprep.subr.bf16.mxu0 0
        %783 = vmatpush1.bf16.msra.mxu0 %v718
        %784 = vmatprep.subr.bf16.mxu0 0
        %785 = vmatpush1.bf16.msra.mxu0 %v719
        %786 = vmatprep.subr.bf16.mxu0 0
        %787 = vmatpush1.bf16.msra.mxu0 %v720
        %788 = vmatprep.subr.bf16.mxu0 0
        %789 = vmatpush1.bf16.msra.mxu0 %v721
        %790 = vmatprep.subr.bf16.mxu0 0
        %791 = vmatpush1.bf16.msra.mxu0 %v722
        %792 = vmatprep.subr.bf16.mxu0 0
        %793 = vmatpush1.bf16.msra.mxu0 %v723
        %794 = vmatprep.subr.bf16.mxu0 0
        %795 = vmatpush1.bf16.msra.mxu0 %v724
        %796 = vmatprep.subr.bf16.mxu0 0
        %797 = vmatpush1.bf16.msra.mxu0 %v725
        %798 = vmatprep.subr.bf16.mxu0 0
        %799 = vmatpush1.bf16.msra.mxu0 %v726
        %800 = vmatprep.subr.bf16.mxu0 0
        %801 = vmatpush1.bf16.msra.mxu0 %v727
        %802 = vmatprep.subr.bf16.mxu0 0
        %803 = vmatpush1.bf16.msra.mxu0 %v728
        %804 = vmatprep.subr.bf16.mxu0 0
        %805 = vmatpush1.bf16.msra.mxu0 %v729
        %806 = vmatprep.subr.bf16.mxu0 0
        %807 = vmatpush1.bf16.msra.mxu0 %v730
        %808 = vmatprep.subr.bf16.mxu0 0
        %809 = vmatpush1.bf16.msra.mxu0 %v731
        %810 = vmatprep.subr.bf16.mxu0 0
        %811 = vmatpush1.bf16.msra.mxu0 %v732
        %812 = vmatprep.subr.bf16.mxu0 0
        %813 = vmatpush1.bf16.msra.mxu0 %v733
        %814 = vmatprep.mubr.bf16.mxu0 %v527
        %815 = vmatmul.mubr.bf16.gmra.mrb[0].mxu0 %v526
        %v816 = vpop.f32.mrb[0].mxu0
        %v817 = vadd.f32 %v428, %v816
        %v818 = vpop.f32.mrb[0].mxu0
        %v819 = vpop.f32.mrb[0].mxu0
        %v820 = vadd.f32 %v428, %v819
        %v821 = vpop.f32.mrb[0].mxu0
        %822 = vmatprep.mubr.bf16.mxu0 %v531
        %823 = vmatmul.mubr.bf16.gmra.mrb[0].mxu0 %v530
        %v824 = vpop.f32.mrb[0].mxu0
        %v825 = vadd.f32 %v428, %v824
        %v826 = vpop.f32.mrb[0].mxu0
        %v827 = vpop.f32.mrb[0].mxu0
        %v828 = vadd.f32 %v428, %v827
        %v829 = vpop.f32.mrb[0].mxu0
        %830 = vmatprep.mubr.bf16.mxu0 %v535
        %831 = vmatmul.mubr.bf16.gmra.mrb[0].mxu0 %v534
        %v832 = vpop.f32.mrb[0].mxu0
        %v833 = vadd.f32 %v428, %v832
        %v834 = vpop.f32.mrb[0].mxu0
        %v835 = vpop.f32.mrb[0].mxu0
        %v836 = vadd.f32 %v428, %v835
        %v837 = vpop.f32.mrb[0].mxu0
        %838 = vmatprep.mubr.bf16.mxu0 %v539
        %839 = vmatmul.mubr.bf16.gmra.mrb[0].mxu0 %v538
        %v840 = vpop.f32.mrb[0].mxu0
        %v841 = vadd.f32 %v428, %v840
        %v842 = vpop.f32.mrb[0].mxu0
        %v843 = vpop.f32.mrb[0].mxu0
        %v844 = vadd.f32 %v428, %v843
        %v845 = vpop.f32.mrb[0].mxu0
        %846 = vmatprep.mubr.bf16.mxu0 %v543
        %847 = vmatmul.mubr.bf16.gmra.mrb[0].mxu0 %v542
        %v848 = vpop.f32.mrb[0].mxu0
        %v849 = vadd.f32 %v428, %v848
        %v850 = vpop.f32.mrb[0].mxu0
        %v851 = vpop.f32.mrb[0].mxu0
        %v852 = vadd.f32 %v428, %v851
        %v853 = vpop.f32.mrb[0].mxu0
        %854 = vmatprep.mubr.bf16.mxu0 %v547
        %855 = vmatmul.mubr.bf16.gmra.mrb[0].mxu0 %v546
        %v856 = vpop.f32.mrb[0].mxu0
        %v857 = vadd.f32 %v428, %v856
        %v858 = vpop.f32.mrb[0].mxu0
        %v859 = vpop.f32.mrb[0].mxu0
        %v860 = vadd.f32 %v428, %v859
        %v861 = vpop.f32.mrb[0].mxu0
        %862 = vmatprep.mubr.bf16.mxu0 %v551
        %863 = vmatmul.mubr.bf16.gmra.mrb[0].mxu0 %v550
        %v864 = vpop.f32.mrb[0].mxu0
        %v865 = vadd.f32 %v428, %v864
        %v866 = vpop.f32.mrb[0].mxu0
        %v867 = vpop.f32.mrb[0].mxu0
        %v868 = vadd.f32 %v428, %v867
        %v869 = vpop.f32.mrb[0].mxu0
        %870 = vmatprep.mubr.bf16.mxu0 %v555
        %871 = vmatmul.mubr.bf16.gmra.mrb[0].mxu0 %v554
        %v872 = vpop.f32.mrb[0].mxu0
        %v873 = vadd.f32 %v428, %v872
        %v874 = vpop.f32.mrb[0].mxu0
        %v875 = vpop.f32.mrb[0].mxu0
        %v876 = vadd.f32 %v428, %v875
        %v877 = vpop.f32.mrb[0].mxu0
        %878 = vdwg.mxu0
        %879 = vmatprep.subr.bf16.mxu0 0
        %880 = vmatpush1.bf16.msra.mxu0 %v734
        %881 = vmatprep.subr.bf16.mxu0 0
        %882 = vmatpush1.bf16.msra.mxu0 %v735
        %883 = vmatprep.subr.bf16.mxu0 0
        %884 = vmatpush1.bf16.msra.mxu0 %v736
        %885 = vmatprep.subr.bf16.mxu0 0
        %886 = vmatpush1.bf16.msra.mxu0 %v737
        %887 = vmatprep.subr.bf16.mxu0 0
        %888 = vmatpush1.bf16.msra.mxu0 %v738
        %889 = vmatprep.subr.bf16.mxu0 0
        %890 = vmatpush1.bf16.msra.mxu0 %v739
        %891 = vmatprep.subr.bf16.mxu0 0
        %892 = vmatpush1.bf16.msra.mxu0 %v740
        %893 = vmatprep.subr.bf16.mxu0 0
        %894 = vmatpush1.bf16.msra.mxu0 %v741
        %895 = vmatprep.subr.bf16.mxu0 0
        %896 = vmatpush1.bf16.msra.mxu0 %v742
        %897 = vmatprep.subr.bf16.mxu0 0
        %898 = vmatpush1.bf16.msra.mxu0 %v743
        %899 = vmatprep.subr.bf16.mxu0 0
        %900 = vmatpush1.bf16.msra.mxu0 %v744
        %901 = vmatprep.subr.bf16.mxu0 0
        %902 = vmatpush1.bf16.msra.mxu0 %v745
        %903 = vmatprep.subr.bf16.mxu0 0
        %904 = vmatpush1.bf16.msra.mxu0 %v746
        %905 = vmatprep.subr.bf16.mxu0 0
        %906 = vmatpush1.bf16.msra.mxu0 %v747
        %907 = vmatprep.subr.bf16.mxu0 0
        %908 = vmatpush1.bf16.msra.mxu0 %v748
        %909 = vmatprep.subr.bf16.mxu0 0
        %910 = vmatpush1.bf16.msra.mxu0 %v749
        %911 = vmatprep.mubr.bf16.mxu0 %v529
        %912 = vmatmul.mubr.bf16.gmra.mrb[0].mxu0 %v528
        %v913 = vpop.f32.mrb[0].mxu0
        %v914 = vadd.f32 %v817, %v913
        %v915 = vpop.f32.mrb[0].mxu0
        %v916 = vpop.f32.mrb[0].mxu0
        %v917 = vadd.f32 %v820, %v916
        %v918 = vpop.f32.mrb[0].mxu0
        %919 = vmatprep.mubr.bf16.mxu0 %v533
        %920 = vmatmul.mubr.bf16.gmra.mrb[0].mxu0 %v532
        %v921 = vpop.f32.mrb[0].mxu0
        %v922 = vadd.f32 %v825, %v921
        %v923 = vpop.f32.mrb[0].mxu0
        %v924 = vpop.f32.mrb[0].mxu0
        %v925 = vadd.f32 %v828, %v924
        %v926 = vpop.f32.mrb[0].mxu0
        %927 = vmatprep.mubr.bf16.mxu0 %v537
        %928 = vmatmul.mubr.bf16.gmra.mrb[0].mxu0 %v536
        %v929 = vpop.f32.mrb[0].mxu0
        %v930 = vadd.f32 %v833, %v929
        %v931 = vpop.f32.mrb[0].mxu0
        %v932 = vpop.f32.mrb[0].mxu0
        %v933 = vadd.f32 %v836, %v932
        %v934 = vpop.f32.mrb[0].mxu0
        %935 = vmatprep.mubr.bf16.mxu0 %v541
        %936 = vmatmul.mubr.bf16.gmra.mrb[0].mxu0 %v540
        %v937 = vpop.f32.mrb[0].mxu0
        %v938 = vadd.f32 %v841, %v937
        %v939 = vpop.f32.mrb[0].mxu0
        %v940 = vpop.f32.mrb[0].mxu0
        %v941 = vadd.f32 %v844, %v940
        %v942 = vpop.f32.mrb[0].mxu0
        %943 = vmatprep.mubr.bf16.mxu0 %v545
        %944 = vmatmul.mubr.bf16.gmra.mrb[0].mxu0 %v544
        %v945 = vpop.f32.mrb[0].mxu0
        %v946 = vadd.f32 %v849, %v945
        %v947 = vpop.f32.mrb[0].mxu0
        %v948 = vpop.f32.mrb[0].mxu0
        %v949 = vadd.f32 %v852, %v948
        %v950 = vpop.f32.mrb[0].mxu0
        %951 = vmatprep.mubr.bf16.mxu0 %v549
        %952 = vmatmul.mubr.bf16.gmra.mrb[0].mxu0 %v548
        %v953 = vpop.f32.mrb[0].mxu0
        %v954 = vadd.f32 %v857, %v953
        %v955 = vpop.f32.mrb[0].mxu0
        %v956 = vpop.f32.mrb[0].mxu0
        %v957 = vadd.f32 %v860, %v956
        %v958 = vpop.f32.mrb[0].mxu0
        %959 = vmatprep.mubr.bf16.mxu0 %v553
        %960 = vmatmul.mubr.bf16.gmra.mrb[0].mxu0 %v552
        %v961 = vpop.f32.mrb[0].mxu0
        %v962 = vadd.f32 %v865, %v961
        %v963 = vpop.f32.mrb[0].mxu0
        %v964 = vpop.f32.mrb[0].mxu0
        %v965 = vadd.f32 %v868, %v964
        %v966 = vpop.f32.mrb[0].mxu0
        %967 = vmatprep.mubr.bf16.mxu0 %v557
        %968 = vmatmul.mubr.bf16.gmra.mrb[0].mxu0 %v556
        %v969 = vpop.f32.mrb[0].mxu0
        %v970 = vadd.f32 %v873, %v969
        %v971 = vpop.f32.mrb[0].mxu0
        %v972 = vpop.f32.mrb[0].mxu0
        %v973 = vadd.f32 %v876, %v972
        %v974 = vpop.f32.mrb[0].mxu0
        %975 = vdwg.mxu0
        %v976 = vld [vmem:[%s289] sm:$0xff]
        %v977 = vld [vmem:[%s289 + $0x8] sm:$0xff]
        %v978 = vld [vmem:[%s289 + $0x10] sm:$0xff]
        %v979 = vld [vmem:[%s289 + $0x18] sm:$0xff]
        %v980 = vld [vmem:[%s289 + $0x20] sm:$0xff]
        %v981 = vld [vmem:[%s289 + $0x28] sm:$0xff]
        %v982 = vld [vmem:[%s289 + $0x30] sm:$0xff]
        %v983 = vld [vmem:[%s289 + $0x38] sm:$0xff]
        %v984 = vld [vmem:[%s289 + $0x40] sm:$0xff]
        %v985 = vld [vmem:[%s289 + $0x48] sm:$0xff]
        %v986 = vld [vmem:[%s289 + $0x50] sm:$0xff]
        %v987 = vld [vmem:[%s289 + $0x58] sm:$0xff]
        %v988 = vld [vmem:[%s289 + $0x60] sm:$0xff]
        %v989 = vld [vmem:[%s289 + $0x68] sm:$0xff]
        %v990 = vld [vmem:[%s289 + $0x70] sm:$0xff]
        %v991 = vld [vmem:[%s289 + $0x78] sm:$0xff]
        %v992 = vadd.f32 %v914, %v976
        %v993 = vadd.f32 %v917, %v977
        %v994 = vadd.f32 %v922, %v978
        %v995 = vadd.f32 %v925, %v979
        %v996 = vadd.f32 %v930, %v980
        %v997 = vadd.f32 %v933, %v981
        %v998 = vadd.f32 %v938, %v982
        %v999 = vadd.f32 %v941, %v983
        %v1000 = vadd.f32 %v946, %v984
        %v1001 = vadd.f32 %v949, %v985
        %v1002 = vadd.f32 %v954, %v986
        %v1003 = vadd.f32 %v957, %v987
        %v1004 = vadd.f32 %v962, %v988
        %v1005 = vadd.f32 %v965, %v989
        %v1006 = vadd.f32 %v970, %v990
        %v1007 = vadd.f32 %v973, %v991
        %1008 = vadd.xlane.f32.xlu0 %v992
        %v1009 = vpop.xlane.xlu0 %1008
        %1010 = vadd.xlane.f32.xlu0 %v993
        %v1011 = vpop.xlane.xlu0 %1010
        %1012 = vadd.xlane.f32.xlu0 %v994
        %v1013 = vpop.xlane.xlu0 %1012
        %1014 = vadd.xlane.f32.xlu0 %v995
        %v1015 = vpop.xlane.xlu0 %1014
        %1016 = vadd.xlane.f32.xlu0 %v996
        %v1017 = vpop.xlane.xlu0 %1016
        %1018 = vadd.xlane.f32.xlu0 %v997
        %v1019 = vpop.xlane.xlu0 %1018
        %1020 = vadd.xlane.f32.xlu0 %v998
        %v1021 = vpop.xlane.xlu0 %1020
        %1022 = vadd.xlane.f32.xlu0 %v999
        %v1023 = vpop.xlane.xlu0 %1022
        %1024 = vadd.xlane.f32.xlu0 %v1000
        %v1025 = vpop.xlane.xlu0 %1024
        %1026 = vadd.xlane.f32.xlu0 %v1001
        %v1027 = vpop.xlane.xlu0 %1026
        %1028 = vadd.xlane.f32.xlu0 %v1002
        %v1029 = vpop.xlane.xlu0 %1028
        %1030 = vadd.xlane.f32.xlu0 %v1003
        %v1031 = vpop.xlane.xlu0 %1030
        %1032 = vadd.xlane.f32.xlu0 %v1004
        %v1033 = vpop.xlane.xlu0 %1032
        %1034 = vadd.xlane.f32.xlu0 %v1005
        %v1035 = vpop.xlane.xlu0 %1034
        %1036 = vadd.xlane.f32.xlu0 %v1006
        %v1037 = vpop.xlane.xlu0 %1036
        %1038 = vadd.xlane.f32.xlu0 %v1007
        %v1039 = vpop.xlane.xlu0 %1038
        %v1040 = vrcp.pop 128.0
        %v1041 = vmul.f32 %v1009, %v1040
        %v1042 = vmul.f32 %v1011, %v1040
        %v1043 = vmul.f32 %v1013, %v1040
        %v1044 = vmul.f32 %v1015, %v1040
        %v1045 = vmul.f32 %v1017, %v1040
        %v1046 = vmul.f32 %v1019, %v1040
        %v1047 = vmul.f32 %v1021, %v1040
        %v1048 = vmul.f32 %v1023, %v1040
        %v1049 = vmul.f32 %v1025, %v1040
        %v1050 = vmul.f32 %v1027, %v1040
        %v1051 = vmul.f32 %v1029, %v1040
        %v1052 = vmul.f32 %v1031, %v1040
        %v1053 = vmul.f32 %v1033, %v1040
        %v1054 = vmul.f32 %v1035, %v1040
        %v1055 = vmul.f32 %v1037, %v1040
        %v1056 = vmul.f32 %v1039, %v1040
        %v1057 = vsub.f32 %v992, %v1041
        %v1058 = vsub.f32 %v993, %v1042
        %v1059 = vsub.f32 %v994, %v1043
        %v1060 = vsub.f32 %v995, %v1044
        %v1061 = vsub.f32 %v996, %v1045
        %v1062 = vsub.f32 %v997, %v1046
        %v1063 = vsub.f32 %v998, %v1047
        %v1064 = vsub.f32 %v999, %v1048
        %v1065 = vsub.f32 %v1000, %v1049
        %v1066 = vsub.f32 %v1001, %v1050
        %v1067 = vsub.f32 %v1002, %v1051
        %v1068 = vsub.f32 %v1003, %v1052
        %v1069 = vsub.f32 %v1004, %v1053
        %v1070 = vsub.f32 %v1005, %v1054
        %v1071 = vsub.f32 %v1006, %v1055
        %v1072 = vsub.f32 %v1007, %v1056
        %v1073 = vmul.f32 %v1057, %v1057
        %v1074 = vmul.f32 %v1058, %v1058
        %v1075 = vmul.f32 %v1059, %v1059
        %v1076 = vmul.f32 %v1060, %v1060
        %v1077 = vmul.f32 %v1061, %v1061
        %v1078 = vmul.f32 %v1062, %v1062
        %v1079 = vmul.f32 %v1063, %v1063
        %v1080 = vmul.f32 %v1064, %v1064
        %v1081 = vmul.f32 %v1065, %v1065
        %v1082 = vmul.f32 %v1066, %v1066
        %v1083 = vmul.f32 %v1067, %v1067
        %v1084 = vmul.f32 %v1068, %v1068
        %v1085 = vmul.f32 %v1069, %v1069
        %v1086 = vmul.f32 %v1070, %v1070
        %v1087 = vmul.f32 %v1071, %v1071
        %v1088 = vmul.f32 %v1072, %v1072
        %1089 = vadd.xlane.f32.xlu0 %v1073
        %v1090 = vpop.xlane.xlu0 %1089
        %1091 = vadd.xlane.f32.xlu0 %v1074
        %v1092 = vpop.xlane.xlu0 %1091
        %1093 = vadd.xlane.f32.xlu0 %v1075
        %v1094 = vpop.xlane.xlu0 %1093
        %1095 = vadd.xlane.f32.xlu0 %v1076
        %v1096 = vpop.xlane.xlu0 %1095
        %1097 = vadd.xlane.f32.xlu0 %v1077
        %v1098 = vpop.xlane.xlu0 %1097
        %1099 = vadd.xlane.f32.xlu0 %v1078
        %v1100 = vpop.xlane.xlu0 %1099
        %1101 = vadd.xlane.f32.xlu0 %v1079
        %v1102 = vpop.xlane.xlu0 %1101
        %1103 = vadd.xlane.f32.xlu0 %v1080
        %v1104 = vpop.xlane.xlu0 %1103
        %1105 = vadd.xlane.f32.xlu0 %v1081
        %v1106 = vpop.xlane.xlu0 %1105
        %1107 = vadd.xlane.f32.xlu0 %v1082
        %v1108 = vpop.xlane.xlu0 %1107
        %1109 = vadd.xlane.f32.xlu0 %v1083
        %v1110 = vpop.xlane.xlu0 %1109
        %1111 = vadd.xlane.f32.xlu0 %v1084
        %v1112 = vpop.xlane.xlu0 %1111
        %1113 = vadd.xlane.f32.xlu0 %v1085
        %v1114 = vpop.xlane.xlu0 %1113
        %1115 = vadd.xlane.f32.xlu0 %v1086
        %v1116 = vpop.xlane.xlu0 %1115
        %1117 = vadd.xlane.f32.xlu0 %v1087
        %v1118 = vpop.xlane.xlu0 %1117
        %1119 = vadd.xlane.f32.xlu0 %v1088
        %v1120 = vpop.xlane.xlu0 %1119
        %v1121 = vmul.f32 %v1090, %v1040
        %v1122 = vmul.f32 %v1092, %v1040
        %v1123 = vmul.f32 %v1094, %v1040
        %v1124 = vmul.f32 %v1096, %v1040
        %v1125 = vmul.f32 %v1098, %v1040
        %v1126 = vmul.f32 %v1100, %v1040
        %v1127 = vmul.f32 %v1102, %v1040
        %v1128 = vmul.f32 %v1104, %v1040
        %v1129 = vmul.f32 %v1106, %v1040
        %v1130 = vmul.f32 %v1108, %v1040
        %v1131 = vmul.f32 %v1110, %v1040
        %v1132 = vmul.f32 %v1112, %v1040
        %v1133 = vmul.f32 %v1114, %v1040
        %v1134 = vmul.f32 %v1116, %v1040
        %v1135 = vmul.f32 %v1118, %v1040
        %v1136 = vmul.f32 %v1120, %v1040
        %v1137 = vadd.f32 %v1121, 1e-12
        %v1138 = vadd.f32 %v1122, 1e-12
        %v1139 = vadd.f32 %v1123, 1e-12
        %v1140 = vadd.f32 %v1124, 1e-12
        %v1141 = vadd.f32 %v1125, 1e-12
        %v1142 = vadd.f32 %v1126, 1e-12
        %v1143 = vadd.f32 %v1127, 1e-12
        %v1144 = vadd.f32 %v1128, 1e-12
        %v1145 = vadd.f32 %v1129, 1e-12
        %v1146 = vadd.f32 %v1130, 1e-12
        %v1147 = vadd.f32 %v1131, 1e-12
        %v1148 = vadd.f32 %v1132, 1e-12
        %v1149 = vadd.f32 %v1133, 1e-12
        %v1150 = vadd.f32 %v1134, 1e-12
        %v1151 = vadd.f32 %v1135, 1e-12
        %v1152 = vadd.f32 %v1136, 1e-12
        %v1153 = vrsqrt.pop %v1137
        %v1154 = vrsqrt.pop %v1138
        %v1155 = vrsqrt.pop %v1139
        %v1156 = vrsqrt.pop %v1140
        %v1157 = vrsqrt.pop %v1141
        %v1158 = vrsqrt.pop %v1142
        %v1159 = vrsqrt.pop %v1143
        %v1160 = vrsqrt.pop %v1144
        %v1161 = vrsqrt.pop %v1145
        %v1162 = vrsqrt.pop %v1146
        %v1163 = vrsqrt.pop %v1147
        %v1164 = vrsqrt.pop %v1148
        %v1165 = vrsqrt.pop %v1149
        %v1166 = vrsqrt.pop %v1150
        %v1167 = vrsqrt.pop %v1151
        %v1168 = vrsqrt.pop %v1152
        %v1169 = vmul.f32 %v1057, %v1153
        %v1170 = vmul.f32 %v1058, %v1154
        %v1171 = vmul.f32 %v1059, %v1155
        %v1172 = vmul.f32 %v1060, %v1156
        %v1173 = vmul.f32 %v1061, %v1157
        %v1174 = vmul.f32 %v1062, %v1158
        %v1175 = vmul.f32 %v1063, %v1159
        %v1176 = vmul.f32 %v1064, %v1160
        %v1177 = vmul.f32 %v1065, %v1161
        %v1178 = vmul.f32 %v1066, %v1162
        %v1179 = vmul.f32 %v1067, %v1163
        %v1180 = vmul.f32 %v1068, %v1164
        %v1181 = vmul.f32 %v1069, %v1165
        %v1182 = vmul.f32 %v1070, %v1166
        %v1183 = vmul.f32 %v1071, %v1167
        %v1184 = vmul.f32 %v1072, %v1168
        %v1185 = vld [vmem:[%s4] sm:$0x1]
        %v1187 = vlaneseq
        %v1188 = vshrl.u32 %v1187, 7
        %v1189 = vsub.s32 0, %v1188
        %v1190 = vrot.slane %v1185, %v1189
        %v1192 = vmul.f32 %v1169, %v1190
        %v1193 = vmul.f32 %v1170, %v1190
        %v1194 = vmul.f32 %v1171, %v1190
        %v1195 = vmul.f32 %v1172, %v1190
        %v1196 = vmul.f32 %v1173, %v1190
        %v1197 = vmul.f32 %v1174, %v1190
        %v1198 = vmul.f32 %v1175, %v1190
        %v1199 = vmul.f32 %v1176, %v1190
        %v1200 = vmul.f32 %v1177, %v1190
        %v1201 = vmul.f32 %v1178, %v1190
        %v1202 = vmul.f32 %v1179, %v1190
        %v1203 = vmul.f32 %v1180, %v1190
        %v1204 = vmul.f32 %v1181, %v1190
        %v1205 = vmul.f32 %v1182, %v1190
        %v1206 = vmul.f32 %v1183, %v1190
        %v1207 = vmul.f32 %v1184, %v1190
        %v1208 = vld [vmem:[%s5] sm:$0x1]
        %v1210 = vlaneseq
        %v1211 = vshrl.u32 %v1210, 7
        %v1212 = vsub.s32 0, %v1211
        %v1213 = vrot.slane %v1208, %v1212
        %v1215 = vadd.f32 %v1192, %v1213
        %v1216 = vadd.f32 %v1193, %v1213
        %v1217 = vadd.f32 %v1194, %v1213
        %v1218 = vadd.f32 %v1195, %v1213
        %v1219 = vadd.f32 %v1196, %v1213
        %v1220 = vadd.f32 %v1197, %v1213
        %v1221 = vadd.f32 %v1198, %v1213
        %v1222 = vadd.f32 %v1199, %v1213
        %v1223 = vadd.f32 %v1200, %v1213
        %v1224 = vadd.f32 %v1201, %v1213
        %v1225 = vadd.f32 %v1202, %v1213
        %v1226 = vadd.f32 %v1203, %v1213
        %v1227 = vadd.f32 %v1204, %v1213
        %v1228 = vadd.f32 %v1205, %v1213
        %v1229 = vadd.f32 %v1206, %v1213
        %v1230 = vadd.f32 %v1207, %v1213
        %1231 = vst [vmem:[%s322] sm:$0xff] %v1215
        %1232 = vst [vmem:[%s322 + $0x8] sm:$0xff] %v1216
        %1233 = vst [vmem:[%s322 + $0x10] sm:$0xff] %v1217
        %1234 = vst [vmem:[%s322 + $0x18] sm:$0xff] %v1218
        %1235 = vst [vmem:[%s322 + $0x20] sm:$0xff] %v1219
        %1236 = vst [vmem:[%s322 + $0x28] sm:$0xff] %v1220
        %1237 = vst [vmem:[%s322 + $0x30] sm:$0xff] %v1221
        %1238 = vst [vmem:[%s322 + $0x38] sm:$0xff] %v1222
        %1239 = vst [vmem:[%s322 + $0x40] sm:$0xff] %v1223
        %1240 = vst [vmem:[%s322 + $0x48] sm:$0xff] %v1224
        %1241 = vst [vmem:[%s322 + $0x50] sm:$0xff] %v1225
        %1242 = vst [vmem:[%s322 + $0x58] sm:$0xff] %v1226
        %1243 = vst [vmem:[%s322 + $0x60] sm:$0xff] %v1227
        %1244 = vst [vmem:[%s322 + $0x68] sm:$0xff] %v1228
        %1245 = vst [vmem:[%s322 + $0x70] sm:$0xff] %v1229
        %1246 = vst [vmem:[%s322 + $0x78] sm:$0xff] %v1230
        %s1247 = sand.u32 %s168, 1
        %s1248 = scalar_lea.sflag [#allocation4], %s1247
        %s1249 = sand.u32 %s168, 1
        %s1250 = smul.addr %s1249, 128
        %s1251 = scalar_lea.vmem [#allocation8], %s1250
        // Predicated region
        $region57: #{_bert_output_forward_impl.1} parent=43 // pred_check
          %p1252 = pneg %p178
        $region58: #{_bert_output_forward_impl.1} parent=43 // pred_check_branch
          %1254 = sbr.rel (%p1252) target = $region60
        $region59: #{_bert_output_forward_impl.1} parent=43 // pred_region
          %s1255 = smul.u32 16, %s24
          %s1257 = ssub.s32 2048, 2048
          %1258 = vsyncadd %s1248, %s1257
          %s1259 = smul.addr %s1255, 128
          %s1260 = scalar_lea.hbm %s6, %s1259
          %s1261 = sshll.u32 %s1251, 4
          %s1262 = int_to_ptr.vmem [resolvable:$true] %s1261
          %1267 = dma.vmem_to_hbm [thread:$0]  %s1262, 2048, %s1260, %s1248, 128, 128, 8
        $region60: #{_bert_output_forward_impl.1} parent=43 // pred_fallthru
          _
      $region44: #{_bert_output_forward_impl.1} parent=5 // pred_fallthru
        _
      %p1268 = scmp.le.s32.totalorder 2, %s19
      // Predicated region
      $region61: #{_bert_output_forward_impl.1} parent=5 // pred_check
        %p1269 = pneg %p1268
      $region62: #{_bert_output_forward_impl.1} parent=5 // pred_check_branch
        %1271 = sbr.rel (%p1269) target = $region64
      $region63: #{_bert_output_forward_impl.1} parent=5 // pred_region
        %s1272 = ssub.s32 %s19, 2
        // Predicated region
        $region65: #{_bert_output_forward_impl.1} parent=63 // pred_check
          %p1273 = pneg %p184
        $region66: #{_bert_output_forward_impl.1} parent=63 // pred_check_branch
          %1275 = sbr.rel (%p1273) target = $region68
        $region67: #{_bert_output_forward_impl.1} parent=63 // pred_region
          %s1276 = sand.u32 %s169, 1
          %s1277 = scalar_lea.sflag [#allocation4], %s1276
          %s1278 = sand.u32 %s169, 1
          %s1279 = smul.addr %s1278, 128
          %s1280 = scalar_lea.vmem [#allocation8], %s1279
          %1281 = dma.done %s1277, 2048
        $region68: #{_bert_output_forward_impl.1} parent=63 // pred_fallthru
          _
      $region64: #{_bert_output_forward_impl.1} parent=5 // pred_fallthru
        _
    $region6: #{_bert_output_forward_impl.1} parent=1 // loop_footer
      %s23 = sadd.s32 1, %s19
    $region7: #{_bert_output_forward_impl.1} parent=1 // loop_footer_branch
      %18 = sbr.rel target = $region3
    $region8: #{_bert_output_forward_impl.1} parent=1 // loop_exit
      _
    %1282 = vsyncpa [#allocation3], 1
    %s1283 = scalar_lea.sflag [#allocation3], 1
    %1284 = vsyncpa %s1283, 1
    %1285 = vsyncpa [#allocation6], 1
    %1286 = vsyncpa [#allocation4], 1
    %s1287 = scalar_lea.sflag [#allocation4], 1
    %1288 = vsyncpa %s1287, 1

// kernel: _bert_output_forward_impl.1
$region0: #{_bert_output_forward_impl.1}
  #allocation0 [shape = 'u32[]', space=smem, size = 0x4, offset = 0x4, fixed_abs, tag = 'smem constant byte address 0x4 - core index']
  #allocation1 [shape = 'u32[144,128]{1,0:T(1,128)}', space=vmem, size = 0x12000, scoped, tag = 'internal scratch']
  %s0 = inlined_call_operand.hbm [shape: bf16[256,512], index: 0, kind: input, shape index: {}]
  %s1 = inlined_call_operand.hbm [shape: bf16[512,128], index: 1, kind: input, shape index: {}]
  %s2 = inlined_call_operand.vmem [shape: f32[1,128], index: 2, kind: input, shape index: {}]
  %s3 = inlined_call_operand.hbm [shape: f32[256,128], index: 3, kind: input, shape index: {}]
  %s4 = inlined_call_operand.vmem [shape: f32[1,128], index: 4, kind: input, shape index: {}]
  %s5 = inlined_call_operand.vmem [shape: f32[1,128], index: 5, kind: input, shape index: {}]
  %s6 = inlined_call_operand.hbm [shape: f32[256,128], index: 6, kind: output, shape index: {}]
  %s7 = sld [smem:[#allocation0]]
  $region69: #{_bert_output_forward_impl.1} parent=0
    _
  %s9 = ssub.s32 1, %s7
  %s10 = scalar_select 0, %s9, %s7
  $region1: #{_bert_output_forward_impl.1} parent=0
    #allocation2 [shape = 'u8[262144]{0}', space=vmem, size = 0x40000, scoped, tag = 'input window, operand 0']
    #allocation3 [shape = 's32[2]{0}', space=sflag, size = 0x8, scoped, tag = 'scoped memory for _bert_output_forward_impl.1']
    #allocation4 [shape = 's32[2]{0}', space=sflag, size = 0x8, scoped, tag = 'scoped memory for _bert_output_forward_impl.1']
    #allocation5 [shape = 'u8[131072]{0}', space=vmem, size = 0x20000, scoped, tag = 'input window, operand 1, single buffered']
    #allocation6 [shape = 's32[1]{0}', space=sflag, size = 0x4, scoped, tag = 'scoped memory for _bert_output_forward_impl.1']
    #allocation7 [shape = 'u8[131072]{0}', space=vmem, size = 0x20000, scoped, tag = 'input window, operand 3']
    #allocation8 [shape = 'u8[131072]{0}', space=vmem, size = 0x20000, scoped, tag = 'output window, operand 0']
    %11 = vsyncpa [#allocation3], 0
    %s12 = scalar_lea.sflag [#allocation3], 1
    %13 = vsyncpa %s12, 0
    %14 = vsyncpa [#allocation6], 0
    %15 = vsyncpa [#allocation4], 0
    %s16 = scalar_lea.sflag [#allocation4], 1
    %17 = vsyncpa %s16, 0
    loop: start=0, step=1, limit=4
    $region2: #{_bert_output_forward_impl.1} parent=1 // loop_pre_header
      _
    $region3: #{_bert_output_forward_impl.1} parent=1 // loop_header
      %s19 = sphi 0, %s23
      %p20 = scmp.ge.s32.totalorder %s19, 4
      %s29 = sphi 0, %s31
      %s32 = sphi 0, %s29
      %s33 = sphi 0, %s32
      %s49 = sphi 0, %s33
      %s53 = sphi 0, %s53
      %s55 = sphi 0, %s53
      %s56 = sphi 0, %s55
      %s70 = sphi 0, %s56
      %s74 = sphi 0, %s74
      %s76 = sphi 0, %s74
      %s77 = sphi 0, %s76
      %s91 = sphi 0, %s77
      %s97 = sphi 0, %s99
      %s100 = sphi 0, %s97
      %s101 = sphi 0, %s100
      %s117 = sphi 0, %s101
      %s121 = sphi 0, %s121
      %s123 = sphi 0, %s121
      %s124 = sphi 0, %s123
      %s138 = sphi 0, %s124
      %s142 = sphi 0, %s142
      %s144 = sphi 0, %s142
      %s145 = sphi 0, %s144
      %s159 = sphi 0, %s145
      %s165 = sphi 0, %s167
      %s168 = sphi 0, %s165
      %s169 = sphi 0, %s168
      %s185 = sphi 0, %s169
    $region4: #{_bert_output_forward_impl.1} parent=1 // loop_header_branch
      %22 = sbr.rel (%p20) target = $region8
    $region5: #{_bert_output_forward_impl.1} parent=1 // loop_body
      %s24 = ssub.s32 %s19, 1
      %s25 = ssub.s32 %s19, 2
      %s26 = sadd.s32 %s19, 1
      %s27 = ssub.s32 %s19, %s26
      %p28 = scmp.eq.s32.totalorder %s27, 0
      %s30 = sadd.s32 %s29, 1
      %s31 = scalar_select %p28, %s29, %s30
      %p34 = pneg %p28
      %p35 = scmp.eq.s32.totalorder %s19, 1
      %p36 = por %p34, %p35
      %p37 = scmp.ne.s32.totalorder %s29, %s32
      %p38 = scmp.eq.s32.totalorder %s19, 0
      %p39 = por %p37, %p38
      %p40 = scmp.ne.s32.totalorder %s29, %s32
      %p41 = scmp.eq.s32.totalorder %s24, 1
      %p42 = por %p40, %p41
      %p43 = scmp.ne.s32.totalorder %s32, %s33
      %p44 = scmp.eq.s32.totalorder %s24, 0
      %p45 = por %p43, %p44
      %p46 = scmp.ne.s32.totalorder %s32, %s33
      %p47 = scmp.eq.s32.totalorder %s25, 1
      %p48 = por %p46, %p47
      %p50 = scmp.ne.s32.totalorder %s33, %s49
      %p51 = scmp.eq.s32.totalorder %s25, 0
      %p52 = por %p50, %p51
      %s54 = sadd.s32 %s53, 1
      %p57 = scmp.eq.s32.totalorder %s19, 1
      %p58 = scmp.ne.s32.totalorder %s53, %s55
      %p59 = scmp.eq.s32.totalorder %s19, 0
      %p60 = por %p58, %p59
      %p61 = scmp.ne.s32.totalorder %s53, %s55
      %p62 = scmp.eq.s32.totalorder %s24, 1
      %p63 = por %p61, %p62
      %p64 = scmp.ne.s32.totalorder %s55, %s56
      %p65 = scmp.eq.s32.totalorder %s24, 0
      %p66 = por %p64, %p65
      %p67 = scmp.ne.s32.totalorder %s55, %s56
      %p68 = scmp.eq.s32.totalorder %s25, 1
      %p69 = por %p67, %p68
      %p71 = scmp.ne.s32.totalorder %s56, %s70
      %p72 = scmp.eq.s32.totalorder %s25, 0
      %p73 = por %p71, %p72
      %s75 = sadd.s32 %s74, 1
      %p78 = scmp.eq.s32.totalorder %s19, 1
      %p79 = scmp.ne.s32.totalorder %s74, %s76
      %p80 = scmp.eq.s32.totalorder %s19, 0
      %p81 = por %p79, %p80
      %p82 = scmp.ne.s32.totalorder %s74, %s76
      %p83 = scmp.eq.s32.totalorder %s24, 1
      %p84 = por %p82, %p83
      %p85 = scmp.ne.s32.totalorder %s76, %s77
      %p86 = scmp.eq.s32.totalorder %s24, 0
      %p87 = por %p85, %p86
      %p88 = scmp.ne.s32.totalorder %s76, %s77
      %p89 = scmp.eq.s32.totalorder %s25, 1
      %p90 = por %p88, %p89
      %p92 = scmp.ne.s32.totalorder %s77, %s91
      %p93 = scmp.eq.s32.totalorder %s25, 0
      %p94 = por %p92, %p93
      %s95 = ssub.s32 %s19, %s26
      %p96 = scmp.eq.s32.totalorder %s95, 0
      %s98 = sadd.s32 %s97, 1
      %s99 = scalar_select %p96, %s97, %s98
      %p102 = pneg %p96
      %p103 = scmp.eq.s32.totalorder %s19, 1
      %p104 = por %p102, %p103
      %p105 = scmp.ne.s32.totalorder %s97, %s100
      %p106 = scmp.eq.s32.totalorder %s19, 0
      %p107 = por %p105, %p106
      %p108 = scmp.ne.s32.totalorder %s97, %s100
      %p109 = scmp.eq.s32.totalorder %s24, 1
      %p110 = por %p108, %p109
      %p111 = scmp.ne.s32.totalorder %s100, %s101
      %p112 = scmp.eq.s32.totalorder %s24, 0
      %p113 = por %p111, %p112
      %p114 = scmp.ne.s32.totalorder %s100, %s101
      %p115 = scmp.eq.s32.totalorder %s25, 1
      %p116 = por %p114, %p115
      %p118 = scmp.ne.s32.totalorder %s101, %s117
      %p119 = scmp.eq.s32.totalorder %s25, 0
      %p120 = por %p118, %p119
      %s122 = sadd.s32 %s121, 1
      %p125 = scmp.eq.s32.totalorder %s19, 1
      %p126 = scmp.ne.s32.totalorder %s121, %s123
      %p127 = scmp.eq.s32.totalorder %s19, 0
      %p128 = por %p126, %p127
      %p129 = scmp.ne.s32.totalorder %s121, %s123
      %p130 = scmp.eq.s32.totalorder %s24, 1
      %p131 = por %p129, %p130
      %p132 = scmp.ne.s32.totalorder %s123, %s124
      %p133 = scmp.eq.s32.totalorder %s24, 0
      %p134 = por %p132, %p133
      %p135 = scmp.ne.s32.totalorder %s123, %s124
      %p136 = scmp.eq.s32.totalorder %s25, 1
      %p137 = por %p135, %p136
      %p139 = scmp.ne.s32.totalorder %s124, %s138
      %p140 = scmp.eq.s32.totalorder %s25, 0
      %p141 = por %p139, %p140
      %s143 = sadd.s32 %s142, 1
      %p146 = scmp.eq.s32.totalorder %s19, 1
      %p147 = scmp.ne.s32.totalorder %s142, %s144
      %p148 = scmp.eq.s32.totalorder %s19, 0
      %p149 = por %p147, %p148
      %p150 = scmp.ne.s32.totalorder %s142, %s144
      %p151 = scmp.eq.s32.totalorder %s24, 1
      %p152 = por %p150, %p151
      %p153 = scmp.ne.s32.totalorder %s144, %s145
      %p154 = scmp.eq.s32.totalorder %s24, 0
      %p155 = por %p153, %p154
      %p156 = scmp.ne.s32.totalorder %s144, %s145
      %p157 = scmp.eq.s32.totalorder %s25, 1
      %p158 = por %p156, %p157
      %p160 = scmp.ne.s32.totalorder %s145, %s159
      %p161 = scmp.eq.s32.totalorder %s25, 0
      %p162 = por %p160, %p161
      %s163 = ssub.s32 %s19, %s26
      %p164 = scmp.eq.s32.totalorder %s163, 0
      %s166 = sadd.s32 %s165, 1
      %s167 = scalar_select %p164, %s165, %s166
      %p170 = pneg %p164
      %p171 = scmp.eq.s32.totalorder %s19, 1
      %p172 = por %p170, %p171
      %p173 = scmp.ne.s32.totalorder %s165, %s168
      %p174 = scmp.eq.s32.totalorder %s19, 0
      %p175 = por %p173, %p174
      %p176 = scmp.ne.s32.totalorder %s165, %s168
      %p177 = scmp.eq.s32.totalorder %s24, 1
      %p178 = por %p176, %p177
      %p179 = scmp.ne.s32.totalorder %s168, %s169
      %p180 = scmp.eq.s32.totalorder %s24, 0
      %p181 = por %p179, %p180
      %p182 = scmp.ne.s32.totalorder %s168, %s169
      %p183 = scmp.eq.s32.totalorder %s25, 1
      %p184 = por %p182, %p183
      %p186 = scmp.ne.s32.totalorder %s169, %s185
      %p187 = scmp.eq.s32.totalorder %s25, 0
      %p188 = por %p186, %p187
      %p189 = scmp.le.s32.totalorder 1, %s19
      %p190 = scmp.lt.s32.totalorder %s19, 3
      %p191 = pnand %p189, %p190
      %p192 = pneg %p191
      // Predicated region
      $region9: #{_bert_output_forward_impl.1} parent=5 // pred_check
        _
      $region10: #{_bert_output_forward_impl.1} parent=5 // pred_check_branch
        %194 = sbr.rel (%p191) target = $region12
      $region11: #{_bert_output_forward_impl.1} parent=5 // pred_region
        %s195 = ssub.s32 %s19, 1
        // Predicated region
        $region13: #{_bert_output_forward_impl.1} parent=11 // pred_check
          %p196 = pneg %p66
        $region14: #{_bert_output_forward_impl.1} parent=11 // pred_check_branch
          %198 = sbr.rel (%p196) target = $region16
        $region15: #{_bert_output_forward_impl.1} parent=11 // pred_region
          %s200 = ssub.s32 4096, 4096
          %201 = vsyncadd [#allocation6], %s200
          %s202 = sshll.u32 [#allocation5], 4
          %s203 = int_to_ptr.vmem [resolvable:$true] %s202
          %208 = dma.hbm_to_vmem [thread:$0]  %s1, 4096, %s203, [#allocation6], 64, 64, 4
        $region16: #{_bert_output_forward_impl.1} parent=11 // pred_fallthru
          _
        // Predicated region
        $region17: #{_bert_output_forward_impl.1} parent=11 // pred_check
          %p209 = pneg %p87
        $region18: #{_bert_output_forward_impl.1} parent=11 // pred_check_branch
          %211 = sbr.rel (%p209) target = $region20
        $region19: #{_bert_output_forward_impl.1} parent=11 // pred_region
          _
        $region20: #{_bert_output_forward_impl.1} parent=11 // pred_fallthru
          _
        // Predicated region
        $region21: #{_bert_output_forward_impl.1} parent=11 // pred_check
          %p212 = pneg %p134
        $region22: #{_bert_output_forward_impl.1} parent=11 // pred_check_branch
          %214 = sbr.rel (%p212) target = $region24
        $region23: #{_bert_output_forward_impl.1} parent=11 // pred_region
          _
        $region24: #{_bert_output_forward_impl.1} parent=11 // pred_fallthru
          _
        // Predicated region
        $region25: #{_bert_output_forward_impl.1} parent=11 // pred_check
          %p215 = pneg %p155
        $region26: #{_bert_output_forward_impl.1} parent=11 // pred_check_branch
          %217 = sbr.rel (%p215) target = $region28
        $region27: #{_bert_output_forward_impl.1} parent=11 // pred_region
          _
        $region28: #{_bert_output_forward_impl.1} parent=11 // pred_fallthru
          _
      $region12: #{_bert_output_forward_impl.1} parent=5 // pred_fallthru
        _
      %p218 = scmp.lt.s32.totalorder %s19, 2
      // Predicated region
      $region29: #{_bert_output_forward_impl.1} parent=5 // pred_check
        %p219 = pneg %p218
      $region30: #{_bert_output_forward_impl.1} parent=5 // pred_check_branch
        %221 = sbr.rel (%p219) target = $region32
      $region31: #{_bert_output_forward_impl.1} parent=5 // pred_region
        // Predicated region
        $region33: #{_bert_output_forward_impl.1} parent=31 // pred_check
          %p222 = pneg %p39
        $region34: #{_bert_output_forward_impl.1} parent=31 // pred_check_branch
          %224 = sbr.rel (%p222) target = $region36
        $region35: #{_bert_output_forward_impl.1} parent=31 // pred_region
          %s225 = sand.u32 %s19, 1
          %s226 = scalar_lea.sflag [#allocation3], %s225
          %s227 = sand.u32 %s29, 1
          %s228 = smul.addr %s227, 256
          %s229 = scalar_lea.vmem [#allocation2], %s228
          %s230 = smul.u32 16, %s19
          %s232 = ssub.s32 4096, 4096
          %233 = vsyncadd %s226, %s232
          %s234 = smul.addr %s230, 4
          %s235 = smul.addr %s234, 64
          %s236 = scalar_lea.hbm %s0, %s235
          %s237 = sshll.u32 %s229, 4
          %s238 = int_to_ptr.vmem [resolvable:$true] %s237
          %243 = dma.hbm_to_vmem [thread:$0]  %s236, 4096, %s238, %s226, 256, 256, 16
        $region36: #{_bert_output_forward_impl.1} parent=31 // pred_fallthru
          _
        // Predicated region
        $region37: #{_bert_output_forward_impl.1} parent=31 // pred_check
          %p244 = pneg %p107
        $region38: #{_bert_output_forward_impl.1} parent=31 // pred_check_branch
          %246 = sbr.rel (%p244) target = $region40
        $region39: #{_bert_output_forward_impl.1} parent=31 // pred_region
          %s247 = sand.u32 %s19, 1
          %s248 = scalar_lea.sflag [#allocation3], %s247
          %s249 = sand.u32 %s97, 1
          %s250 = smul.addr %s249, 128
          %s251 = scalar_lea.vmem [#allocation7], %s250
          %s252 = smul.u32 16, %s19
          %s254 = ssub.s32 2048, 2048
          %255 = vsyncadd %s248, %s254
          %s256 = smul.addr %s252, 128
          %s257 = scalar_lea.hbm %s3, %s256
          %s258 = sshll.u32 %s251, 4
          %s259 = int_to_ptr.vmem [resolvable:$true] %s258
          %264 = dma.hbm_to_vmem [thread:$0]  %s257, 2048, %s259, %s248, 128, 128, 8
        $region40: #{_bert_output_forward_impl.1} parent=31 // pred_fallthru
          _
      $region32: #{_bert_output_forward_impl.1} parent=5 // pred_fallthru
        _
      %p265 = scmp.le.s32.totalorder 1, %s19
      %p266 = scmp.lt.s32.totalorder %s19, 3
      %p267 = pnand %p265, %p266
      %p268 = pneg %p267
      // Predicated region
      $region41: #{_bert_output_forward_impl.1} parent=5 // pred_check
        _
      $region42: #{_bert_output_forward_impl.1} parent=5 // pred_check_branch
        %270 = sbr.rel (%p267) target = $region44
      $region43: #{_bert_output_forward_impl.1} parent=5 // pred_region
        %s271 = ssub.s32 %s19, 1
        %s272 = sand.u32 %s24, 1
        %s273 = scalar_lea.sflag [#allocation3], %s272
        %s274 = sand.u32 %s32, 1
        %s275 = smul.addr %s274, 256
        %s276 = scalar_lea.vmem [#allocation2], %s275
        // Predicated region
        $region45: #{_bert_output_forward_impl.1} parent=43 // pred_check
          %p277 = pneg %p45
        $region46: #{_bert_output_forward_impl.1} parent=43 // pred_check_branch
          %279 = sbr.rel (%p277) target = $region48
        $region47: #{_bert_output_forward_impl.1} parent=43 // pred_region
          %280 = dma.done %s273, 4096
        $region48: #{_bert_output_forward_impl.1} parent=43 // pred_fallthru
          _
        // Predicated region
        $region49: #{_bert_output_forward_impl.1} parent=43 // pred_check
          %p281 = pneg %p66
        $region50: #{_bert_output_forward_impl.1} parent=43 // pred_check_branch
          %283 = sbr.rel (%p281) target = $region52
        $region51: #{_bert_output_forward_impl.1} parent=43 // pred_region
          %284 = dma.done [#allocation6], 4096
        $region52: #{_bert_output_forward_impl.1} parent=43 // pred_fallthru
          _
        %s285 = sand.u32 %s24, 1
        %s286 = scalar_lea.sflag [#allocation3], %s285
        %s287 = sand.u32 %s100, 1
        %s288 = smul.addr %s287, 128
        %s289 = scalar_lea.vmem [#allocation7], %s288
        // Predicated region
        $region53: #{_bert_output_forward_impl.1} parent=43 // pred_check
          %p290 = pneg %p113
        $region54: #{_bert_output_forward_impl.1} parent=43 // pred_check_branch
          %292 = sbr.rel (%p290) target = $region56
        $region55: #{_bert_output_forward_impl.1} parent=43 // pred_region
          %293 = dma.done %s286, 2048
        $region56: #{_bert_output_forward_impl.1} parent=43 // pred_fallthru
          _
        %s294 = sand.u32 %s24, 1
        %s295 = scalar_lea.sflag [#allocation3], %s294
        %s296 = sand.u32 %s32, 1
        %s297 = smul.addr %s296, 256
        %s298 = scalar_lea.vmem [#allocation2], %s297
        %p299 = pneg %p45
        %p300 = pneg %p42
        %p301 = pneg %p66
        %p302 = pneg %p63
        %p303 = pneg %p87
        %p304 = pneg %p84
        %s305 = sand.u32 %s24, 1
        %s306 = scalar_lea.sflag [#allocation3], %s305
        %s307 = sand.u32 %s100, 1
        %s308 = smul.addr %s307, 128
        %s309 = scalar_lea.vmem [#allocation7], %s308
        %p310 = pneg %p113
        %p311 = pneg %p110
        %p312 = pneg %p134
        %p313 = pneg %p131
        %p314 = pneg %p155
        %p315 = pneg %p152
        %p316 = pneg %p181
        %p317 = pneg %p178
        %s318 = sand.u32 %s168, 1
        %s319 = scalar_lea.sflag [#allocation4], %s318
        %s320 = sand.u32 %s168, 1
        %s321 = smul.addr %s320, 128
        %s322 = scalar_lea.vmem [#allocation8], %s321
        %s323 = smul.u32 16, %s24
        %s324 = smul.u32 16, %s24
        %s325 = smul.u32 16, %s24
        %v327 = vld [vmem:[%s276] sm:$0xff]
        %v328 = vld [vmem:[%s276 + $0x8] sm:$0xff]
        %v329 = vld [vmem:[%s276 + $0x10] sm:$0xff]
        %v330 = vld [vmem:[%s276 + $0x18] sm:$0xff]
        %v331 = vld [vmem:[%s276 + $0x20] sm:$0xff]
        %v332 = vld [vmem:[%s276 + $0x28] sm:$0xff]
        %v333 = vld [vmem:[%s276 + $0x30] sm:$0xff]
        %v334 = vld [vmem:[%s276 + $0x38] sm:$0xff]
        %v335 = vld [vmem:[%s276 + $0x40] sm:$0xff]
        %v336 = vld [vmem:[%s276 + $0x48] sm:$0xff]
        %v337 = vld [vmem:[%s276 + $0x50] sm:$0xff]
        %v338 = vld [vmem:[%s276 + $0x58] sm:$0xff]
        %v339 = vld [vmem:[%s276 + $0x60] sm:$0xff]
        %v340 = vld [vmem:[%s276 + $0x68] sm:$0xff]
        %v341 = vld [vmem:[%s276 + $0x70] sm:$0xff]
        %v342 = vld [vmem:[%s276 + $0x78] sm:$0xff]
        %v343 = vld [vmem:[%s276 + $0x80] sm:$0xff]
        %v344 = vld [vmem:[%s276 + $0x88] sm:$0xff]
        %v345 = vld [vmem:[%s276 + $0x90] sm:$0xff]
        %v346 = vld [vmem:[%s276 + $0x98] sm:$0xff]
        %v347 = vld [vmem:[%s276 + $0xa0] sm:$0xff]
        %v348 = vld [vmem:[%s276 + $0xa8] sm:$0xff]
        %v349 = vld [vmem:[%s276 + $0xb0] sm:$0xff]
        %v350 = vld [vmem:[%s276 + $0xb8] sm:$0xff]
        %v351 = vld [vmem:[%s276 + $0xc0] sm:$0xff]
        %v352 = vld [vmem:[%s276 + $0xc8] sm:$0xff]
        %v353 = vld [vmem:[%s276 + $0xd0] sm:$0xff]
        %v354 = vld [vmem:[%s276 + $0xd8] sm:$0xff]
        %v355 = vld [vmem:[%s276 + $0xe0] sm:$0xff]
        %v356 = vld [vmem:[%s276 + $0xe8] sm:$0xff]
        %v357 = vld [vmem:[%s276 + $0xf0] sm:$0xff]
        %v358 = vld [vmem:[%s276 + $0xf8] sm:$0xff]
        %v359 = vld [vmem:[#allocation5] sm:$0xf]
        %v360 = vld [vmem:[#allocation5 + $0x4] sm:$0xf]
        %v361 = vld [vmem:[#allocation5 + $0x8] sm:$0xf]
        %v362 = vld [vmem:[#allocation5 + $0xc] sm:$0xf]
        %v363 = vld [vmem:[#allocation5 + $0x10] sm:$0xf]
        %v364 = vld [vmem:[#allocation5 + $0x14] sm:$0xf]
        %v365 = vld [vmem:[#allocation5 + $0x18] sm:$0xf]
        %v366 = vld [vmem:[#allocation5 + $0x1c] sm:$0xf]
        %v367 = vld [vmem:[#allocation5 + $0x20] sm:$0xf]
        %v368 = vld [vmem:[#allocation5 + $0x24] sm:$0xf]
        %v369 = vld [vmem:[#allocation5 + $0x28] sm:$0xf]
        %v370 = vld [vmem:[#allocation5 + $0x2c] sm:$0xf]
        %v371 = vld [vmem:[#allocation5 + $0x30] sm:$0xf]
        %v372 = vld [vmem:[#allocation5 + $0x34] sm:$0xf]
        %v373 = vld [vmem:[#allocation5 + $0x38] sm:$0xf]
        %v374 = vld [vmem:[#allocation5 + $0x3c] sm:$0xf]
        %v375 = vld [vmem:[#allocation5 + $0x40] sm:$0xf]
        %v376 = vld [vmem:[#allocation5 + $0x44] sm:$0xf]
        %v377 = vld [vmem:[#allocation5 + $0x48] sm:$0xf]
        %v378 = vld [vmem:[#allocation5 + $0x4c] sm:$0xf]
        %v379 = vld [vmem:[#allocation5 + $0x50] sm:$0xf]
        %v380 = vld [vmem:[#allocation5 + $0x54] sm:$0xf]
        %v381 = vld [vmem:[#allocation5 + $0x58] sm:$0xf]
        %v382 = vld [vmem:[#allocation5 + $0x5c] sm:$0xf]
        %v383 = vld [vmem:[#allocation5 + $0x60] sm:$0xf]
        %v384 = vld [vmem:[#allocation5 + $0x64] sm:$0xf]
        %v385 = vld [vmem:[#allocation5 + $0x68] sm:$0xf]
        %v386 = vld [vmem:[#allocation5 + $0x6c] sm:$0xf]
        %v387 = vld [vmem:[#allocation5 + $0x70] sm:$0xf]
        %v388 = vld [vmem:[#allocation5 + $0x74] sm:$0xf]
        %v389 = vld [vmem:[#allocation5 + $0x78] sm:$0xf]
        %v390 = vld [vmem:[#allocation5 + $0x7c] sm:$0xf]
        %v391 = vld [vmem:[#allocation5 + $0x80] sm:$0xf]
        %v392 = vld [vmem:[#allocation5 + $0x84] sm:$0xf]
        %v393 = vld [vmem:[#allocation5 + $0x88] sm:$0xf]
        %v394 = vld [vmem:[#allocation5 + $0x8c] sm:$0xf]
        %v395 = vld [vmem:[#allocation5 + $0x90] sm:$0xf]
        %v396 = vld [vmem:[#allocation5 + $0x94] sm:$0xf]
        %v397 = vld [vmem:[#allocation5 + $0x98] sm:$0xf]
        %v398 = vld [vmem:[#allocation5 + $0x9c] sm:$0xf]
        %v399 = vld [vmem:[#allocation5 + $0xa0] sm:$0xf]
        %v400 = vld [vmem:[#allocation5 + $0xa4] sm:$0xf]
        %v401 = vld [vmem:[#allocation5 + $0xa8] sm:$0xf]
        %v402 = vld [vmem:[#allocation5 + $0xac] sm:$0xf]
        %v403 = vld [vmem:[#allocation5 + $0xb0] sm:$0xf]
        %v404 = vld [vmem:[#allocation5 + $0xb4] sm:$0xf]
        %v405 = vld [vmem:[#allocation5 + $0xb8] sm:$0xf]
        %v406 = vld [vmem:[#allocation5 + $0xbc] sm:$0xf]
        %v407 = vld [vmem:[#allocation5 + $0xc0] sm:$0xf]
        %v408 = vld [vmem:[#allocation5 + $0xc4] sm:$0xf]
        %v409 = vld [vmem:[#allocation5 + $0xc8] sm:$0xf]
        %v410 = vld [vmem:[#allocation5 + $0xcc] sm:$0xf]
        %v411 = vld [vmem:[#allocation5 + $0xd0] sm:$0xf]
        %v412 = vld [vmem:[#allocation5 + $0xd4] sm:$0xf]
        %v413 = vld [vmem:[#allocation5 + $0xd8] sm:$0xf]
        %v414 = vld [vmem:[#allocation5 + $0xdc] sm:$0xf]
        %v415 = vld [vmem:[#allocation5 + $0xe0] sm:$0xf]
        %v416 = vld [vmem:[#allocation5 + $0xe4] sm:$0xf]
        %v417 = vld [vmem:[#allocation5 + $0xe8] sm:$0xf]
        %v418 = vld [vmem:[#allocation5 + $0xec] sm:$0xf]
        %v419 = vld [vmem:[#allocation5 + $0xf0] sm:$0xf]
        %v420 = vld [vmem:[#allocation5 + $0xf4] sm:$0xf]
        %v421 = vld [vmem:[#allocation5 + $0xf8] sm:$0xf]
        %v422 = vld [vmem:[#allocation5 + $0xfc] sm:$0xf]
        %v423 = vld [vmem:[%s2] sm:$0x1]
        %v425 = vlaneseq
        %v426 = vshrl.u32 %v425, 7
        %v427 = vsub.s32 0, %v426
        %v428 = vrot.slane %v423, %v427
        %v462 = vunpack.c.l.b16 %v327
        %v463 = vunpack.c.h.b16 %v327
        %v464 = vunpack.c.l.b16 %v328
        %v465 = vunpack.c.h.b16 %v328
        %v466 = vunpack.c.l.b16 %v329
        %v467 = vunpack.c.h.b16 %v329
        %v468 = vunpack.c.l.b16 %v330
        %v469 = vunpack.c.h.b16 %v330
        %v470 = vunpack.c.l.b16 %v331
        %v471 = vunpack.c.h.b16 %v331
        %v472 = vunpack.c.l.b16 %v332
        %v473 = vunpack.c.h.b16 %v332
        %v474 = vunpack.c.l.b16 %v333
        %v475 = vunpack.c.h.b16 %v333
        %v476 = vunpack.c.l.b16 %v334
        %v477 = vunpack.c.h.b16 %v334
        %v478 = vunpack.c.l.b16 %v335
        %v479 = vunpack.c.h.b16 %v335
        %v480 = vunpack.c.l.b16 %v336
        %v481 = vunpack.c.h.b16 %v336
        %v482 = vunpack.c.l.b16 %v337
        %v483 = vunpack.c.h.b16 %v337
        %v484 = vunpack.c.l.b16 %v338
        %v485 = vunpack.c.h.b16 %v338
        %v486 = vunpack.c.l.b16 %v339
        %v487 = vunpack.c.h.b16 %v339
        %v488 = vunpack.c.l.b16 %v340
        %v489 = vunpack.c.h.b16 %v340
        %v490 = vunpack.c.l.b16 %v341
        %v491 = vunpack.c.h.b16 %v341
        %v492 = vunpack.c.l.b16 %v342
        %v493 = vunpack.c.h.b16 %v342
        %v494 = vunpack.c.l.b16 %v343
        %v495 = vunpack.c.h.b16 %v343
        %v496 = vunpack.c.l.b16 %v344
        %v497 = vunpack.c.h.b16 %v344
        %v498 = vunpack.c.l.b16 %v345
        %v499 = vunpack.c.h.b16 %v345
        %v500 = vunpack.c.l.b16 %v346
        %v501 = vunpack.c.h.b16 %v346
        %v502 = vunpack.c.l.b16 %v347
        %v503 = vunpack.c.h.b16 %v347
        %v504 = vunpack.c.l.b16 %v348
        %v505 = vunpack.c.h.b16 %v348
        %v506 = vunpack.c.l.b16 %v349
        %v507 = vunpack.c.h.b16 %v349
        %v508 = vunpack.c.l.b16 %v350
        %v509 = vunpack.c.h.b16 %v350
        %v510 = vunpack.c.l.b16 %v351
        %v511 = vunpack.c.h.b16 %v351
        %v512 = vunpack.c.l.b16 %v352
        %v513 = vunpack.c.h.b16 %v352
        %v514 = vunpack.c.l.b16 %v353
        %v515 = vunpack.c.h.b16 %v353
        %v516 = vunpack.c.l.b16 %v354
        %v517 = vunpack.c.h.b16 %v354
        %v518 = vunpack.c.l.b16 %v355
        %v519 = vunpack.c.h.b16 %v355
        %v520 = vunpack.c.l.b16 %v356
        %v521 = vunpack.c.h.b16 %v356
        %v522 = vunpack.c.l.b16 %v357
        %v523 = vunpack.c.h.b16 %v357
        %v524 = vunpack.c.l.b16 %v358
        %v525 = vunpack.c.h.b16 %v358
        %v526 = vpack.c.b16 %v466, %v462
        %v527 = vpack.c.b16 %v467, %v463
        %v528 = vpack.c.b16 %v468, %v464
        %v529 = vpack.c.b16 %v469, %v465
        %v530 = vpack.c.b16 %v474, %v470
        %v531 = vpack.c.b16 %v475, %v471
        %v532 = vpack.c.b16 %v476, %v472
        %v533 = vpack.c.b16 %v477, %v473
        %v534 = vpack.c.b16 %v482, %v478
        %v535 = vpack.c.b16 %v483, %v479
        %v536 = vpack.c.b16 %v484, %v480
        %v537 = vpack.c.b16 %v485, %v481
        %v538 = vpack.c.b16 %v490, %v486
        %v539 = vpack.c.b16 %v491, %v487
        %v540 = vpack.c.b16 %v492, %v488
        %v541 = vpack.c.b16 %v493, %v489
        %v542 = vpack.c.b16 %v498, %v494
        %v543 = vpack.c.b16 %v499, %v495
        %v544 = vpack.c.b16 %v500, %v496
        %v545 = vpack.c.b16 %v501, %v497
        %v546 = vpack.c.b16 %v506, %v502
        %v547 = vpack.c.b16 %v507, %v503
        %v548 = vpack.c.b16 %v508, %v504
        %v549 = vpack.c.b16 %v509, %v505
        %v550 = vpack.c.b16 %v514, %v510
        %v551 = vpack.c.b16 %v515, %v511
        %v552 = vpack.c.b16 %v516, %v512
        %v553 = vpack.c.b16 %v517, %v513
        %v554 = vpack.c.b16 %v522, %v518
        %v555 = vpack.c.b16 %v523, %v519
        %v556 = vpack.c.b16 %v524, %v520
        %v557 = vpack.c.b16 %v525, %v521
        %v654 = vunpack.c.l.b16 %v359
        %v655 = vunpack.c.l.b16 %v360
        %v656 = vunpack.c.l.b16 %v361
        %v657 = vunpack.c.l.b16 %v362
        %v658 = vunpack.c.l.b16 %v363
        %v659 = vunpack.c.l.b16 %v364
        %v660 = vunpack.c.l.b16 %v365
        %v661 = vunpack.c.l.b16 %v366
        %v662 = vunpack.c.l.b16 %v367
        %v663 = vunpack.c.l.b16 %v368
        %v664 = vunpack.c.l.b16 %v369
        %v665 = vunpack.c.l.b16 %v370
        %v666 = vunpack.c.l.b16 %v371
        %v667 = vunpack.c.l.b16 %v372
        %v668 = vunpack.c.l.b16 %v373
        %v669 = vunpack.c.l.b16 %v374
        %v670 = vunpack.c.l.b16 %v375
        %v671 = vunpack.c.l.b16 %v376
        %v672 = vunpack.c.l.b16 %v377
        %v673 = vunpack.c.l.b16 %v378
        %v674 = vunpack.c.l.b16 %v379
        %v675 = vunpack.c.l.b16 %v380
        %v676 = vunpack.c.l.b16 %v381
        %v677 = vunpack.c.l.b16 %v382
        %v678 = vunpack.c.l.b16 %v383
        %v679 = vunpack.c.l.b16 %v384
        %v680 = vunpack.c.l.b16 %v385
        %v681 = vunpack.c.l.b16 %v386
        %v682 = vunpack.c.l.b16 %v387
        %v683 = vunpack.c.l.b16 %v388
        %v684 = vunpack.c.l.b16 %v389
        %v685 = vunpack.c.l.b16 %v390
        %v686 = vunpack.c.l.b16 %v391
        %v687 = vunpack.c.l.b16 %v392
        %v688 = vunpack.c.l.b16 %v393
        %v689 = vunpack.c.l.b16 %v394
        %v690 = vunpack.c.l.b16 %v395
        %v691 = vunpack.c.l.b16 %v396
        %v692 = vunpack.c.l.b16 %v397
        %v693 = vunpack.c.l.b16 %v398
        %v694 = vunpack.c.l.b16 %v399
        %v695 = vunpack.c.l.b16 %v400
        %v696 = vunpack.c.l.b16 %v401
        %v697 = vunpack.c.l.b16 %v402
        %v698 = vunpack.c.l.b16 %v403
        %v699 = vunpack.c.l.b16 %v404
        %v700 = vunpack.c.l.b16 %v405
        %v701 = vunpack.c.l.b16 %v406
        %v702 = vunpack.c.l.b16 %v407
        %v703 = vunpack.c.l.b16 %v408
        %v704 = vunpack.c.l.b16 %v409
        %v705 = vunpack.c.l.b16 %v410
        %v706 = vunpack.c.l.b16 %v411
        %v707 = vunpack.c.l.b16 %v412
        %v708 = vunpack.c.l.b16 %v413
        %v709 = vunpack.c.l.b16 %v414
        %v710 = vunpack.c.l.b16 %v415
        %v711 = vunpack.c.l.b16 %v416
        %v712 = vunpack.c.l.b16 %v417
        %v713 = vunpack.c.l.b16 %v418
        %v714 = vunpack.c.l.b16 %v419
        %v715 = vunpack.c.l.b16 %v420
        %v716 = vunpack.c.l.b16 %v421
        %v717 = vunpack.c.l.b16 %v422
        %v718 = vpack.c.b16 %v655, %v654
        %v719 = vpack.c.b16 %v657, %v656
        %v720 = vpack.c.b16 %v659, %v658
        %v721 = vpack.c.b16 %v661, %v660
        %v722 = vpack.c.b16 %v663, %v662
        %v723 = vpack.c.b16 %v665, %v664
        %v724 = vpack.c.b16 %v667, %v666
        %v725 = vpack.c.b16 %v669, %v668
        %v726 = vpack.c.b16 %v671, %v670
        %v727 = vpack.c.b16 %v673, %v672
        %v728 = vpack.c.b16 %v675, %v674
        %v729 = vpack.c.b16 %v677, %v676
        %v730 = vpack.c.b16 %v679, %v678
        %v731 = vpack.c.b16 %v681, %v680
        %v732 = vpack.c.b16 %v683, %v682
        %v733 = vpack.c.b16 %v685, %v684
        %v734 = vpack.c.b16 %v687, %v686
        %v735 = vpack.c.b16 %v689, %v688
        %v736 = vpack.c.b16 %v691, %v690
        %v737 = vpack.c.b16 %v693, %v692
        %v738 = vpack.c.b16 %v695, %v694
        %v739 = vpack.c.b16 %v697, %v696
        %v740 = vpack.c.b16 %v699, %v698
        %v741 = vpack.c.b16 %v701, %v700
        %v742 = vpack.c.b16 %v703, %v702
        %v743 = vpack.c.b16 %v705, %v704
        %v744 = vpack.c.b16 %v707, %v706
        %v745 = vpack.c.b16 %v709, %v708
        %v746 = vpack.c.b16 %v711, %v710
        %v747 = vpack.c.b16 %v713, %v712
        %v748 = vpack.c.b16 %v715, %v714
        %v749 = vpack.c.b16 %v717, %v716
        %782 = vmatprep.subr.bf16.mxu0 0
        %783 = vmatpush1.bf16.msra.mxu0 %v718
        %784 = vmatprep.subr.bf16.mxu0 0
        %785 = vmatpush1.bf16.msra.mxu0 %v719
        %786 = vmatprep.subr.bf16.mxu0 0
        %787 = vmatpush1.bf16.msra.mxu0 %v720
        %788 = vmatprep.subr.bf16.mxu0 0
        %789 = vmatpush1.bf16.msra.mxu0 %v721
        %790 = vmatprep.subr.bf16.mxu0 0
        %791 = vmatpush1.bf16.msra.mxu0 %v722
        %792 = vmatprep.subr.bf16.mxu0 0
        %793 = vmatpush1.bf16.msra.mxu0 %v723
        %794 = vmatprep.subr.bf16.mxu0 0
        %795 = vmatpush1.bf16.msra.mxu0 %v724
        %796 = vmatprep.subr.bf16.mxu0 0
        %797 = vmatpush1.bf16.msra.mxu0 %v725
        %798 = vmatprep.subr.bf16.mxu0 0
        %799 = vmatpush1.bf16.msra.mxu0 %v726
        %800 = vmatprep.subr.bf16.mxu0 0
        %801 = vmatpush1.bf16.msra.mxu0 %v727
        %802 = vmatprep.subr.bf16.mxu0 0
        %803 = vmatpush1.bf16.msra.mxu0 %v728
        %804 = vmatprep.subr.bf16.mxu0 0
        %805 = vmatpush1.bf16.msra.mxu0 %v729
        %806 = vmatprep.subr.bf16.mxu0 0
        %807 = vmatpush1.bf16.msra.mxu0 %v730
        %808 = vmatprep.subr.bf16.mxu0 0
        %809 = vmatpush1.bf16.msra.mxu0 %v731
        %810 = vmatprep.subr.bf16.mxu0 0
        %811 = vmatpush1.bf16.msra.mxu0 %v732
        %812 = vmatprep.subr.bf16.mxu0 0
        %813 = vmatpush1.bf16.msra.mxu0 %v733
        %814 = vmatprep.mubr.bf16.mxu0 %v527
        %815 = vmatmul.mubr.bf16.gmra.mrb[0].mxu0 %v526
        %v816 = vpop.f32.mrb[0].mxu0
        %v817 = vadd.f32 %v428, %v816
        %v818 = vpop.f32.mrb[0].mxu0
        %v819 = vpop.f32.mrb[0].mxu0
        %v820 = vadd.f32 %v428, %v819
        %v821 = vpop.f32.mrb[0].mxu0
        %822 = vmatprep.mubr.bf16.mxu0 %v531
        %823 = vmatmul.mubr.bf16.gmra.mrb[0].mxu0 %v530
        %v824 = vpop.f32.mrb[0].mxu0
        %v825 = vadd.f32 %v428, %v824
        %v826 = vpop.f32.mrb[0].mxu0
        %v827 = vpop.f32.mrb[0].mxu0
        %v828 = vadd.f32 %v428, %v827
        %v829 = vpop.f32.mrb[0].mxu0
        %830 = vmatprep.mubr.bf16.mxu0 %v535
        %831 = vmatmul.mubr.bf16.gmra.mrb[0].mxu0 %v534
        %v832 = vpop.f32.mrb[0].mxu0
        %v833 = vadd.f32 %v428, %v832
        %v834 = vpop.f32.mrb[0].mxu0
        %v835 = vpop.f32.mrb[0].mxu0
        %v836 = vadd.f32 %v428, %v835
        %v837 = vpop.f32.mrb[0].mxu0
        %838 = vmatprep.mubr.bf16.mxu0 %v539
        %839 = vmatmul.mubr.bf16.gmra.mrb[0].mxu0 %v538
        %v840 = vpop.f32.mrb[0].mxu0
        %v841 = vadd.f32 %v428, %v840
        %v842 = vpop.f32.mrb[0].mxu0
        %v843 = vpop.f32.mrb[0].mxu0
        %v844 = vadd.f32 %v428, %v843
        %v845 = vpop.f32.mrb[0].mxu0
        %846 = vmatprep.mubr.bf16.mxu0 %v543
        %847 = vmatmul.mubr.bf16.gmra.mrb[0].mxu0 %v542
        %v848 = vpop.f32.mrb[0].mxu0
        %v849 = vadd.f32 %v428, %v848
        %v850 = vpop.f32.mrb[0].mxu0
        %v851 = vpop.f32.mrb[0].mxu0
        %v852 = vadd.f32 %v428, %v851
        %v853 = vpop.f32.mrb[0].mxu0
        %854 = vmatprep.mubr.bf16.mxu0 %v547
        %855 = vmatmul.mubr.bf16.gmra.mrb[0].mxu0 %v546
        %v856 = vpop.f32.mrb[0].mxu0
        %v857 = vadd.f32 %v428, %v856
        %v858 = vpop.f32.mrb[0].mxu0
        %v859 = vpop.f32.mrb[0].mxu0
        %v860 = vadd.f32 %v428, %v859
        %v861 = vpop.f32.mrb[0].mxu0
        %862 = vmatprep.mubr.bf16.mxu0 %v551
        %863 = vmatmul.mubr.bf16.gmra.mrb[0].mxu0 %v550
        %v864 = vpop.f32.mrb[0].mxu0
        %v865 = vadd.f32 %v428, %v864
        %v866 = vpop.f32.mrb[0].mxu0
        %v867 = vpop.f32.mrb[0].mxu0
        %v868 = vadd.f32 %v428, %v867
        %v869 = vpop.f32.mrb[0].mxu0
        %870 = vmatprep.mubr.bf16.mxu0 %v555
        %871 = vmatmul.mubr.bf16.gmra.mrb[0].mxu0 %v554
        %v872 = vpop.f32.mrb[0].mxu0
        %v873 = vadd.f32 %v428, %v872
        %v874 = vpop.f32.mrb[0].mxu0
        %v875 = vpop.f32.mrb[0].mxu0
        %v876 = vadd.f32 %v428, %v875
        %v877 = vpop.f32.mrb[0].mxu0
        %878 = vdwg.mxu0
        %879 = vmatprep.subr.bf16.mxu0 0
        %880 = vmatpush1.bf16.msra.mxu0 %v734
        %881 = vmatprep.subr.bf16.mxu0 0
        %882 = vmatpush1.bf16.msra.mxu0 %v735
        %883 = vmatprep.subr.bf16.mxu0 0
        %884 = vmatpush1.bf16.msra.mxu0 %v736
        %885 = vmatprep.subr.bf16.mxu0 0
        %886 = vmatpush1.bf16.msra.mxu0 %v737
        %887 = vmatprep.subr.bf16.mxu0 0
        %888 = vmatpush1.bf16.msra.mxu0 %v738
        %889 = vmatprep.subr.bf16.mxu0 0
        %890 = vmatpush1.bf16.msra.mxu0 %v739
        %891 = vmatprep.subr.bf16.mxu0 0
        %892 = vmatpush1.bf16.msra.mxu0 %v740
        %893 = vmatprep.subr.bf16.mxu0 0
        %894 = vmatpush1.bf16.msra.mxu0 %v741
        %895 = vmatprep.subr.bf16.mxu0 0
        %896 = vmatpush1.bf16.msra.mxu0 %v742
        %897 = vmatprep.subr.bf16.mxu0 0
        %898 = vmatpush1.bf16.msra.mxu0 %v743
        %899 = vmatprep.subr.bf16.mxu0 0
        %900 = vmatpush1.bf16.msra.mxu0 %v744
        %901 = vmatprep.subr.bf16.mxu0 0
        %902 = vmatpush1.bf16.msra.mxu0 %v745
        %903 = vmatprep.subr.bf16.mxu0 0
        %904 = vmatpush1.bf16.msra.mxu0 %v746
        %905 = vmatprep.subr.bf16.mxu0 0
        %906 = vmatpush1.bf16.msra.mxu0 %v747
        %907 = vmatprep.subr.bf16.mxu0 0
        %908 = vmatpush1.bf16.msra.mxu0 %v748
        %909 = vmatprep.subr.bf16.mxu0 0
        %910 = vmatpush1.bf16.msra.mxu0 %v749
        %911 = vmatprep.mubr.bf16.mxu0 %v529
        %912 = vmatmul.mubr.bf16.gmra.mrb[0].mxu0 %v528
        %v913 = vpop.f32.mrb[0].mxu0
        %v914 = vadd.f32 %v817, %v913
        %v915 = vpop.f32.mrb[0].mxu0
        %v916 = vpop.f32.mrb[0].mxu0
        %v917 = vadd.f32 %v820, %v916
        %v918 = vpop.f32.mrb[0].mxu0
        %919 = vmatprep.mubr.bf16.mxu0 %v533
        %920 = vmatmul.mubr.bf16.gmra.mrb[0].mxu0 %v532
        %v921 = vpop.f32.mrb[0].mxu0
        %v922 = vadd.f32 %v825, %v921
        %v923 = vpop.f32.mrb[0].mxu0
        %v924 = vpop.f32.mrb[0].mxu0
        %v925 = vadd.f32 %v828, %v924
        %v926 = vpop.f32.mrb[0].mxu0
        %927 = vmatprep.mubr.bf16.mxu0 %v537
        %928 = vmatmul.mubr.bf16.gmra.mrb[0].mxu0 %v536
        %v929 = vpop.f32.mrb[0].mxu0
        %v930 = vadd.f32 %v833, %v929
        %v931 = vpop.f32.mrb[0].mxu0
        %v932 = vpop.f32.mrb[0].mxu0
        %v933 = vadd.f32 %v836, %v932
        %v934 = vpop.f32.mrb[0].mxu0
        %935 = vmatprep.mubr.bf16.mxu0 %v541
        %936 = vmatmul.mubr.bf16.gmra.mrb[0].mxu0 %v540
        %v937 = vpop.f32.mrb[0].mxu0
        %v938 = vadd.f32 %v841, %v937
        %v939 = vpop.f32.mrb[0].mxu0
        %v940 = vpop.f32.mrb[0].mxu0
        %v941 = vadd.f32 %v844, %v940
        %v942 = vpop.f32.mrb[0].mxu0
        %943 = vmatprep.mubr.bf16.mxu0 %v545
        %944 = vmatmul.mubr.bf16.gmra.mrb[0].mxu0 %v544
        %v945 = vpop.f32.mrb[0].mxu0
        %v946 = vadd.f32 %v849, %v945
        %v947 = vpop.f32.mrb[0].mxu0
        %v948 = vpop.f32.mrb[0].mxu0
        %v949 = vadd.f32 %v852, %v948
        %v950 = vpop.f32.mrb[0].mxu0
        %951 = vmatprep.mubr.bf16.mxu0 %v549
        %952 = vmatmul.mubr.bf16.gmra.mrb[0].mxu0 %v548
        %v953 = vpop.f32.mrb[0].mxu0
        %v954 = vadd.f32 %v857, %v953
        %v955 = vpop.f32.mrb[0].mxu0
        %v956 = vpop.f32.mrb[0].mxu0
        %v957 = vadd.f32 %v860, %v956
        %v958 = vpop.f32.mrb[0].mxu0
        %959 = vmatprep.mubr.bf16.mxu0 %v553
        %960 = vmatmul.mubr.bf16.gmra.mrb[0].mxu0 %v552
        %v961 = vpop.f32.mrb[0].mxu0
        %v962 = vadd.f32 %v865, %v961
        %v963 = vpop.f32.mrb[0].mxu0
        %v964 = vpop.f32.mrb[0].mxu0
        %v965 = vadd.f32 %v868, %v964
        %v966 = vpop.f32.mrb[0].mxu0
        %967 = vmatprep.mubr.bf16.mxu0 %v557
        %968 = vmatmul.mubr.bf16.gmra.mrb[0].mxu0 %v556
        %v969 = vpop.f32.mrb[0].mxu0
        %v970 = vadd.f32 %v873, %v969
        %v971 = vpop.f32.mrb[0].mxu0
        %v972 = vpop.f32.mrb[0].mxu0
        %v973 = vadd.f32 %v876, %v972
        %v974 = vpop.f32.mrb[0].mxu0
        %975 = vdwg.mxu0
        %v976 = vld [vmem:[%s289] sm:$0xff]
        %v977 = vld [vmem:[%s289 + $0x8] sm:$0xff]
        %v978 = vld [vmem:[%s289 + $0x10] sm:$0xff]
        %v979 = vld [vmem:[%s289 + $0x18] sm:$0xff]
        %v980 = vld [vmem:[%s289 + $0x20] sm:$0xff]
        %v981 = vld [vmem:[%s289 + $0x28] sm:$0xff]
        %v982 = vld [vmem:[%s289 + $0x30] sm:$0xff]
        %v983 = vld [vmem:[%s289 + $0x38] sm:$0xff]
        %v984 = vld [vmem:[%s289 + $0x40] sm:$0xff]
        %v985 = vld [vmem:[%s289 + $0x48] sm:$0xff]
        %v986 = vld [vmem:[%s289 + $0x50] sm:$0xff]
        %v987 = vld [vmem:[%s289 + $0x58] sm:$0xff]
        %v988 = vld [vmem:[%s289 + $0x60] sm:$0xff]
        %v989 = vld [vmem:[%s289 + $0x68] sm:$0xff]
        %v990 = vld [vmem:[%s289 + $0x70] sm:$0xff]
        %v991 = vld [vmem:[%s289 + $0x78] sm:$0xff]
        %v992 = vadd.f32 %v914, %v976
        %v993 = vadd.f32 %v917, %v977
        %v994 = vadd.f32 %v922, %v978
        %v995 = vadd.f32 %v925, %v979
        %v996 = vadd.f32 %v930, %v980
        %v997 = vadd.f32 %v933, %v981
        %v998 = vadd.f32 %v938, %v982
        %v999 = vadd.f32 %v941, %v983
        %v1000 = vadd.f32 %v946, %v984
        %v1001 = vadd.f32 %v949, %v985
        %v1002 = vadd.f32 %v954, %v986
        %v1003 = vadd.f32 %v957, %v987
        %v1004 = vadd.f32 %v962, %v988
        %v1005 = vadd.f32 %v965, %v989
        %v1006 = vadd.f32 %v970, %v990
        %v1007 = vadd.f32 %v973, %v991
        %1008 = vadd.xlane.f32.xlu0 %v992
        %v1009 = vpop.xlane.xlu0 %1008
        %1010 = vadd.xlane.f32.xlu0 %v993
        %v1011 = vpop.xlane.xlu0 %1010
        %1012 = vadd.xlane.f32.xlu0 %v994
        %v1013 = vpop.xlane.xlu0 %1012
        %1014 = vadd.xlane.f32.xlu0 %v995
        %v1015 = vpop.xlane.xlu0 %1014
        %1016 = vadd.xlane.f32.xlu0 %v996
        %v1017 = vpop.xlane.xlu0 %1016
        %1018 = vadd.xlane.f32.xlu0 %v997
        %v1019 = vpop.xlane.xlu0 %1018
        %1020 = vadd.xlane.f32.xlu0 %v998
        %v1021 = vpop.xlane.xlu0 %1020
        %1022 = vadd.xlane.f32.xlu0 %v999
        %v1023 = vpop.xlane.xlu0 %1022
        %1024 = vadd.xlane.f32.xlu0 %v1000
        %v1025 = vpop.xlane.xlu0 %1024
        %1026 = vadd.xlane.f32.xlu0 %v1001
        %v1027 = vpop.xlane.xlu0 %1026
        %1028 = vadd.xlane.f32.xlu0 %v1002
        %v1029 = vpop.xlane.xlu0 %1028
        %1030 = vadd.xlane.f32.xlu0 %v1003
        %v1031 = vpop.xlane.xlu0 %1030
        %1032 = vadd.xlane.f32.xlu0 %v1004
        %v1033 = vpop.xlane.xlu0 %1032
        %1034 = vadd.xlane.f32.xlu0 %v1005
        %v1035 = vpop.xlane.xlu0 %1034
        %1036 = vadd.xlane.f32.xlu0 %v1006
        %v1037 = vpop.xlane.xlu0 %1036
        %1038 = vadd.xlane.f32.xlu0 %v1007
        %v1039 = vpop.xlane.xlu0 %1038
        %v1040 = vrcp.pop 128.0
        %v1041 = vmul.f32 %v1009, %v1040
        %v1042 = vmul.f32 %v1011, %v1040
        %v1043 = vmul.f32 %v1013, %v1040
        %v1044 = vmul.f32 %v1015, %v1040
        %v1045 = vmul.f32 %v1017, %v1040
        %v1046 = vmul.f32 %v1019, %v1040
        %v1047 = vmul.f32 %v1021, %v1040
        %v1048 = vmul.f32 %v1023, %v1040
        %v1049 = vmul.f32 %v1025, %v1040
        %v1050 = vmul.f32 %v1027, %v1040
        %v1051 = vmul.f32 %v1029, %v1040
        %v1052 = vmul.f32 %v1031, %v1040
        %v1053 = vmul.f32 %v1033, %v1040
        %v1054 = vmul.f32 %v1035, %v1040
        %v1055 = vmul.f32 %v1037, %v1040
        %v1056 = vmul.f32 %v1039, %v1040
        %v1057 = vsub.f32 %v992, %v1041
        %v1058 = vsub.f32 %v993, %v1042
        %v1059 = vsub.f32 %v994, %v1043
        %v1060 = vsub.f32 %v995, %v1044
        %v1061 = vsub.f32 %v996, %v1045
        %v1062 = vsub.f32 %v997, %v1046
        %v1063 = vsub.f32 %v998, %v1047
        %v1064 = vsub.f32 %v999, %v1048
        %v1065 = vsub.f32 %v1000, %v1049
        %v1066 = vsub.f32 %v1001, %v1050
        %v1067 = vsub.f32 %v1002, %v1051
        %v1068 = vsub.f32 %v1003, %v1052
        %v1069 = vsub.f32 %v1004, %v1053
        %v1070 = vsub.f32 %v1005, %v1054
        %v1071 = vsub.f32 %v1006, %v1055
        %v1072 = vsub.f32 %v1007, %v1056
        %v1073 = vmul.f32 %v1057, %v1057
        %v1074 = vmul.f32 %v1058, %v1058
        %v1075 = vmul.f32 %v1059, %v1059
        %v1076 = vmul.f32 %v1060, %v1060
        %v1077 = vmul.f32 %v1061, %v1061
        %v1078 = vmul.f32 %v1062, %v1062
        %v1079 = vmul.f32 %v1063, %v1063
        %v1080 = vmul.f32 %v1064, %v1064
        %v1081 = vmul.f32 %v1065, %v1065
        %v1082 = vmul.f32 %v1066, %v1066
        %v1083 = vmul.f32 %v1067, %v1067
        %v1084 = vmul.f32 %v1068, %v1068
        %v1085 = vmul.f32 %v1069, %v1069
        %v1086 = vmul.f32 %v1070, %v1070
        %v1087 = vmul.f32 %v1071, %v1071
        %v1088 = vmul.f32 %v1072, %v1072
        %1089 = vadd.xlane.f32.xlu0 %v1073
        %v1090 = vpop.xlane.xlu0 %1089
        %1091 = vadd.xlane.f32.xlu0 %v1074
        %v1092 = vpop.xlane.xlu0 %1091
        %1093 = vadd.xlane.f32.xlu0 %v1075
        %v1094 = vpop.xlane.xlu0 %1093
        %1095 = vadd.xlane.f32.xlu0 %v1076
        %v1096 = vpop.xlane.xlu0 %1095
        %1097 = vadd.xlane.f32.xlu0 %v1077
        %v1098 = vpop.xlane.xlu0 %1097
        %1099 = vadd.xlane.f32.xlu0 %v1078
        %v1100 = vpop.xlane.xlu0 %1099
        %1101 = vadd.xlane.f32.xlu0 %v1079
        %v1102 = vpop.xlane.xlu0 %1101
        %1103 = vadd.xlane.f32.xlu0 %v1080
        %v1104 = vpop.xlane.xlu0 %1103
        %1105 = vadd.xlane.f32.xlu0 %v1081
        %v1106 = vpop.xlane.xlu0 %1105
        %1107 = vadd.xlane.f32.xlu0 %v1082
        %v1108 = vpop.xlane.xlu0 %1107
        %1109 = vadd.xlane.f32.xlu0 %v1083
        %v1110 = vpop.xlane.xlu0 %1109
        %1111 = vadd.xlane.f32.xlu0 %v1084
        %v1112 = vpop.xlane.xlu0 %1111
        %1113 = vadd.xlane.f32.xlu0 %v1085
        %v1114 = vpop.xlane.xlu0 %1113
        %1115 = vadd.xlane.f32.xlu0 %v1086
        %v1116 = vpop.xlane.xlu0 %1115
        %1117 = vadd.xlane.f32.xlu0 %v1087
        %v1118 = vpop.xlane.xlu0 %1117
        %1119 = vadd.xlane.f32.xlu0 %v1088
        %v1120 = vpop.xlane.xlu0 %1119
        %v1121 = vmul.f32 %v1090, %v1040
        %v1122 = vmul.f32 %v1092, %v1040
        %v1123 = vmul.f32 %v1094, %v1040
        %v1124 = vmul.f32 %v1096, %v1040
        %v1125 = vmul.f32 %v1098, %v1040
        %v1126 = vmul.f32 %v1100, %v1040
        %v1127 = vmul.f32 %v1102, %v1040
        %v1128 = vmul.f32 %v1104, %v1040
        %v1129 = vmul.f32 %v1106, %v1040
        %v1130 = vmul.f32 %v1108, %v1040
        %v1131 = vmul.f32 %v1110, %v1040
        %v1132 = vmul.f32 %v1112, %v1040
        %v1133 = vmul.f32 %v1114, %v1040
        %v1134 = vmul.f32 %v1116, %v1040
        %v1135 = vmul.f32 %v1118, %v1040
        %v1136 = vmul.f32 %v1120, %v1040
        %v1137 = vadd.f32 %v1121, 1e-12
        %v1138 = vadd.f32 %v1122, 1e-12
        %v1139 = vadd.f32 %v1123, 1e-12
        %v1140 = vadd.f32 %v1124, 1e-12
        %v1141 = vadd.f32 %v1125, 1e-12
        %v1142 = vadd.f32 %v1126, 1e-12
        %v1143 = vadd.f32 %v1127, 1e-12
        %v1144 = vadd.f32 %v1128, 1e-12
        %v1145 = vadd.f32 %v1129, 1e-12
        %v1146 = vadd.f32 %v1130, 1e-12
        %v1147 = vadd.f32 %v1131, 1e-12
        %v1148 = vadd.f32 %v1132, 1e-12
        %v1149 = vadd.f32 %v1133, 1e-12
        %v1150 = vadd.f32 %v1134, 1e-12
        %v1151 = vadd.f32 %v1135, 1e-12
        %v1152 = vadd.f32 %v1136, 1e-12
        %v1153 = vrsqrt.pop %v1137
        %v1154 = vrsqrt.pop %v1138
        %v1155 = vrsqrt.pop %v1139
        %v1156 = vrsqrt.pop %v1140
        %v1157 = vrsqrt.pop %v1141
        %v1158 = vrsqrt.pop %v1142
        %v1159 = vrsqrt.pop %v1143
        %v1160 = vrsqrt.pop %v1144
        %v1161 = vrsqrt.pop %v1145
        %v1162 = vrsqrt.pop %v1146
        %v1163 = vrsqrt.pop %v1147
        %v1164 = vrsqrt.pop %v1148
        %v1165 = vrsqrt.pop %v1149
        %v1166 = vrsqrt.pop %v1150
        %v1167 = vrsqrt.pop %v1151
        %v1168 = vrsqrt.pop %v1152
        %v1169 = vmul.f32 %v1057, %v1153
        %v1170 = vmul.f32 %v1058, %v1154
        %v1171 = vmul.f32 %v1059, %v1155
        %v1172 = vmul.f32 %v1060, %v1156
        %v1173 = vmul.f32 %v1061, %v1157
        %v1174 = vmul.f32 %v1062, %v1158
        %v1175 = vmul.f32 %v1063, %v1159
        %v1176 = vmul.f32 %v1064, %v1160
        %v1177 = vmul.f32 %v1065, %v1161
        %v1178 = vmul.f32 %v1066, %v1162
        %v1179 = vmul.f32 %v1067, %v1163
        %v1180 = vmul.f32 %v1068, %v1164
        %v1181 = vmul.f32 %v1069, %v1165
        %v1182 = vmul.f32 %v1070, %v1166
        %v1183 = vmul.f32 %v1071, %v1167
        %v1184 = vmul.f32 %v1072, %v1168
        %v1185 = vld [vmem:[%s4] sm:$0x1]
        %v1187 = vlaneseq
        %v1188 = vshrl.u32 %v1187, 7
        %v1189 = vsub.s32 0, %v1188
        %v1190 = vrot.slane %v1185, %v1189
        %v1192 = vmul.f32 %v1169, %v1190
        %v1193 = vmul.f32 %v1170, %v1190
        %v1194 = vmul.f32 %v1171, %v1190
        %v1195 = vmul.f32 %v1172, %v1190
        %v1196 = vmul.f32 %v1173, %v1190
        %v1197 = vmul.f32 %v1174, %v1190
        %v1198 = vmul.f32 %v1175, %v1190
        %v1199 = vmul.f32 %v1176, %v1190
        %v1200 = vmul.f32 %v1177, %v1190
        %v1201 = vmul.f32 %v1178, %v1190
        %v1202 = vmul.f32 %v1179, %v1190
        %v1203 = vmul.f32 %v1180, %v1190
        %v1204 = vmul.f32 %v1181, %v1190
        %v1205 = vmul.f32 %v1182, %v1190
        %v1206 = vmul.f32 %v1183, %v1190
        %v1207 = vmul.f32 %v1184, %v1190
        %v1208 = vld [vmem:[%s5] sm:$0x1]
        %v1210 = vlaneseq
        %v1211 = vshrl.u32 %v1210, 7
        %v1212 = vsub.s32 0, %v1211
        %v1213 = vrot.slane %v1208, %v1212
        %v1215 = vadd.f32 %v1192, %v1213
        %v1216 = vadd.f32 %v1193, %v1213
        %v1217 = vadd.f32 %v1194, %v1213
        %v1218 = vadd.f32 %v1195, %v1213
        %v1219 = vadd.f32 %v1196, %v1213
        %v1220 = vadd.f32 %v1197, %v1213
        %v1221 = vadd.f32 %v1198, %v1213
        %v1222 = vadd.f32 %v1199, %v1213
        %v1223 = vadd.f32 %v1200, %v1213
        %v1224 = vadd.f32 %v1201, %v1213
        %v1225 = vadd.f32 %v1202, %v1213
        %v1226 = vadd.f32 %v1203, %v1213
        %v1227 = vadd.f32 %v1204, %v1213
        %v1228 = vadd.f32 %v1205, %v1213
        %v1229 = vadd.f32 %v1206, %v1213
        %v1230 = vadd.f32 %v1207, %v1213
        %1231 = vst [vmem:[%s322] sm:$0xff] %v1215
        %1232 = vst [vmem:[%s322 + $0x8] sm:$0xff] %v1216
        %1233 = vst [vmem:[%s322 + $0x10] sm:$0xff] %v1217
        %1234 = vst [vmem:[%s322 + $0x18] sm:$0xff] %v1218
        %1235 = vst [vmem:[%s322 + $0x20] sm:$0xff] %v1219
        %1236 = vst [vmem:[%s322 + $0x28] sm:$0xff] %v1220
        %1237 = vst [vmem:[%s322 + $0x30] sm:$0xff] %v1221
        %1238 = vst [vmem:[%s322 + $0x38] sm:$0xff] %v1222
        %1239 = vst [vmem:[%s322 + $0x40] sm:$0xff] %v1223
        %1240 = vst [vmem:[%s322 + $0x48] sm:$0xff] %v1224
        %1241 = vst [vmem:[%s322 + $0x50] sm:$0xff] %v1225
        %1242 = vst [vmem:[%s322 + $0x58] sm:$0xff] %v1226
        %1243 = vst [vmem:[%s322 + $0x60] sm:$0xff] %v1227
        %1244 = vst [vmem:[%s322 + $0x68] sm:$0xff] %v1228
        %1245 = vst [vmem:[%s322 + $0x70] sm:$0xff] %v1229
        %1246 = vst [vmem:[%s322 + $0x78] sm:$0xff] %v1230
        %s1247 = sand.u32 %s168, 1
        %s1248 = scalar_lea.sflag [#allocation4], %s1247
        %s1249 = sand.u32 %s168, 1
        %s1250 = smul.addr %s1249, 128
        %s1251 = scalar_lea.vmem [#allocation8], %s1250
        // Predicated region
        $region57: #{_bert_output_forward_impl.1} parent=43 // pred_check
          %p1252 = pneg %p178
        $region58: #{_bert_output_forward_impl.1} parent=43 // pred_check_branch
          %1254 = sbr.rel (%p1252) target = $region60
        $region59: #{_bert_output_forward_impl.1} parent=43 // pred_region
          %s1255 = smul.u32 16, %s24
          %s1257 = ssub.s32 2048, 2048
          %1258 = vsyncadd %s1248, %s1257
          %s1259 = smul.addr %s1255, 128
          %s1260 = scalar_lea.hbm %s6, %s1259
          %s1261 = sshll.u32 %s1251, 4
          %s1262 = int_to_ptr.vmem [resolvable:$true] %s1261
          %1267 = dma.vmem_to_hbm [thread:$0]  %s1262, 2048, %s1260, %s1248, 128, 128, 8
        $region60: #{_bert_output_forward_impl.1} parent=43 // pred_fallthru
          _
      $region44: #{_bert_output_forward_impl.1} parent=5 // pred_fallthru
        _
      %p1268 = scmp.le.s32.totalorder 2, %s19
      // Predicated region
      $region61: #{_bert_output_forward_impl.1} parent=5 // pred_check
        %p1269 = pneg %p1268
      $region62: #{_bert_output_forward_impl.1} parent=5 // pred_check_branch
        %1271 = sbr.rel (%p1269) target = $region64
      $region63: #{_bert_output_forward_impl.1} parent=5 // pred_region
        %s1272 = ssub.s32 %s19, 2
        // Predicated region
        $region65: #{_bert_output_forward_impl.1} parent=63 // pred_check
          %p1273 = pneg %p184
        $region66: #{_bert_output_forward_impl.1} parent=63 // pred_check_branch
          %1275 = sbr.rel (%p1273) target = $region68
        $region67: #{_bert_output_forward_impl.1} parent=63 // pred_region
          %s1276 = sand.u32 %s169, 1
          %s1277 = scalar_lea.sflag [#allocation4], %s1276
          %s1278 = sand.u32 %s169, 1
          %s1279 = smul.addr %s1278, 128
          %s1280 = scalar_lea.vmem [#allocation8], %s1279
          %1281 = dma.done %s1277, 2048
        $region68: #{_bert_output_forward_impl.1} parent=63 // pred_fallthru
          _
      $region64: #{_bert_output_forward_impl.1} parent=5 // pred_fallthru
        _
    $region6: #{_bert_output_forward_impl.1} parent=1 // loop_footer
      %s23 = sadd.s32 1, %s19
    $region7: #{_bert_output_forward_impl.1} parent=1 // loop_footer_branch
      %18 = sbr.rel target = $region3
    $region8: #{_bert_output_forward_impl.1} parent=1 // loop_exit
      _
    %1282 = vsyncpa [#allocation3], 1
    %s1283 = scalar_lea.sflag [#allocation3], 1
    %1284 = vsyncpa %s1283, 1
    %1285 = vsyncpa [#allocation6], 1
    %1286 = vsyncpa [#allocation4], 1
    %s1287 = scalar_lea.sflag [#allocation4], 1
    %1288 = vsyncpa %s1287, 1

</llo_original>
